<compile_context>
chip_gen: v5e
topology: v5e:2x2
jax: 0.10.0
libtpu: 0.0.40
codegen_flags: <defaults>
</compile_context>

<pallas_src>
import math
import jax
import jax.numpy as jnp
from jax.experimental import pallas as pl
from jax.experimental.pallas import tpu as pltpu


def _elu(x):
    # ELU, alpha=1.0 (torch default).  min() keeps exp() off the live-positive branch.
    return jnp.where(x > 0, x, jnp.exp(jnp.minimum(x, 0.0)) - 1.0)


def _round_up(n, m):
    return ((n + m - 1) // m) * m


def critic_kernel(xT_ref, w1T_ref, b1_ref, w2T_ref, b2_ref, w3T_ref, b3_ref,
                  w4_ref, b4_ref, o_ref):
    # Feature-major: activations are (H, BM); batch is the lane axis.
    xT = xT_ref[...]                                   # (IN, BM) f32 (norm folded into w1T)
    w1T = w1T_ref[...]                                 # (H, IN)  f32

    # Layer 1: K=4 -> four VPU broadcast-FMAs instead of an MXU dot.
    h = b1_ref[...] + w1T[:, 0:1] * xT[0:1, :]         # (H,1)*(1,BM) -> (H,BM)
    for k in range(1, xT.shape[0]):
        h = h + w1T[:, k:k + 1] * xT[k:k + 1, :]
    h = _elu(h)                                        # (H, BM) f32

    # Layers 2 & 3: bf16 operands on the MXU, f32 accumulation, f32 bias/ELU.
    h = jnp.dot(w2T_ref[...], h.astype(jnp.bfloat16),
                preferred_element_type=jnp.float32)
    h = _elu(h + b2_ref[...])                          # (H, BM) f32

    h = jnp.dot(w3T_ref[...], h.astype(jnp.bfloat16),
                preferred_element_type=jnp.float32)
    h = _elu(h + b3_ref[...])                          # (H, BM) f32

    # Final (256 -> 1) layer: lane-broadcast multiply + sublane reduction.
    # Result (1, BM) is naturally lane-major -> fully lane-dense store.
    o_ref[...] = jnp.sum(h * w4_ref[...], axis=0, keepdims=True) + b4_ref[...]


def critic_forward(x, kparams, *, block_b=512):
    """x: (B, 4) f32.  kparams: output of prepare_params().  Returns (B,) f32."""
    B = x.shape[0]
    H, IN = kparams["w1T"].shape

    # Batch tiling (batch lives on the lane axis of every block):
    #   * small batches (<=128 rows): a single full-array tile (block == full dim).
    #   * otherwise: BM is a multiple of 128 (lane-dense block rule) and the batch is
    #     split into >= 2 grid steps so v7x can shard across its two TensorCores.
    B8 = _round_up(B, 8)
    if B8 <= 128:
        BM = B8
    else:
        BM = min(_round_up(block_b, 128), _round_up(B8, 128))
        BM = min(BM, _round_up((B8 + 1) // 2, 128))    # guarantee >= 2 grid steps
    B_pad = _round_up(B8, BM)

    xT = x.T                                           # (IN, B): layout plumbing only
    if B_pad != B:
        xT = jnp.pad(xT, ((0, 0), (0, B_pad - B)))

    grid = (B_pad // BM,)
    batch_map = lambda i: (0, i)
    const_map = lambda i: (0, 0)    # weights/biases stay VMEM-resident across the grid

    in_specs = [
        pl.BlockSpec((IN, BM), batch_map),   # xT
        pl.BlockSpec((H, IN), const_map),    # w1T (norm folded in), f32
        pl.BlockSpec((H, 1), const_map),     # b1 column
        pl.BlockSpec((H, H), const_map),     # w2T, bf16
        pl.BlockSpec((H, 1), const_map),     # b2 column
        pl.BlockSpec((H, H), const_map),     # w3T, bf16
        pl.BlockSpec((H, 1), const_map),     # b3 column
        pl.BlockSpec((H, 1), const_map),     # w4 column, f32
        pl.BlockSpec((1, 1), const_map),     # b4
    ]

    param_bytes = sum(int(v.size) * int(v.dtype.itemsize) for v in kparams.values())
    cost = pl.CostEstimate(
        flops=2 * B_pad * (IN * H + 2 * H * H + H),
        transcendentals=3 * B_pad * H,
        bytes_accessed=int(4 * IN * B_pad + 4 * B_pad + param_bytes))

    out = pl.pallas_call(
        critic_kernel,
        out_shape=jax.ShapeDtypeStruct((1, B_pad), jnp.float32),
        grid=grid,
        in_specs=in_specs,
        out_specs=pl.BlockSpec((1, BM), batch_map),    # lane-dense output block
        compiler_params=pltpu.CompilerParams(
            dimension_semantics=("parallel",)),        # v7x: shard batch across 2 TCs
        cost_estimate=cost,
    )(xT, kparams["w1T"], kparams["b1"], kparams["w2T"], kparams["b2"],
      kparams["w3T"], kparams["b3"], kparams["w4"], kparams["b4"])

    return out[0, :B]   # == torch's x.reshape(x.size(0))


# ---------------------------------------------------------------------------
# Parameter construction (torch-equivalent init) and one-time kernel transform
# ---------------------------------------------------------------------------

def xavier_uniform(key, fan_in, fan_out):
    # torch.nn.init.xavier_uniform_ with gain=1.0; stored (in, out) like torch's W^T.
    limit = math.sqrt(6.0 / (fan_in + fan_out))
    return jax.random.uniform(key, (fan_in, fan_out), dtype=jnp.float32,
                              minval=-limit, maxval=limit)


def init_params(key, input_size=4, output_size=1, hidden=256):
    k1, k2, k3, k4 = jax.random.split(key, 4)
    return {
        "w1": xavier_uniform(k1, input_size, hidden),
        "b1": jnp.zeros((1, hidden), dtype=jnp.float32),
        "w2": xavier_uniform(k2, hidden, hidden),
        "b2": jnp.zeros((1, hidden), dtype=jnp.float32),
        "w3": xavier_uniform(k3, hidden, hidden),
        "b3": jnp.zeros((1, hidden), dtype=jnp.float32),
        "w4": xavier_uniform(k4, hidden, output_size),
        "b4": jnp.zeros((1, output_size), dtype=jnp.float32),
    }


def prepare_params(params):
    """One-time transform into the kernel's feature-major layout: fold the norm matrix
    into w1, transpose all weights, bf16-cast the two 256x256 weights, biases as columns."""
    norm = 0.1 * jnp.array([2.0, 5.0, 10.0, 10.0], dtype=jnp.float32)
    w1_folded = params["w1"] * norm.reshape(-1, 1)              # scale the input axis
    return {
        "w1T": w1_folded.T,                                     # (256, 4)   f32
        "b1": params["b1"].reshape(-1, 1),                      # (256, 1)   f32
        "w2T": params["w2"].T.astype(jnp.bfloat16),             # (256, 256) bf16
        "b2": params["b2"].reshape(-1, 1),                      # (256, 1)   f32
        "w3T": params["w3"].T.astype(jnp.bfloat16),             # (256, 256) bf16
        "b3": params["b3"].reshape(-1, 1),                      # (256, 1)   f32
        "w4": params["w4"].reshape(-1, 1),                      # (256, 1)   f32
        "b4": params["b4"].reshape(1, 1),                       # (1, 1)     f32
    }


# ---------------------------------------------------------------------------
# References for correctness checking
# ---------------------------------------------------------------------------

def critic_reference_f32(x, params):
    """Pure-f32 JAX reference matching the torch module exactly."""
    norm = 0.1 * jnp.array([2.0, 5.0, 10.0, 10.0], dtype=jnp.float32)
    h = x * norm
    h = _elu(h @ params["w1"] + params["b1"])
    h = _elu(h @ params["w2"] + params["b2"])
    h = _elu(h @ params["w3"] + params["b3"])
    out = h @ params["w4"] + params["b4"]
    return out.reshape(x.shape[0])


def critic_reference_mixed(x, kp):
    """JAX reference mirroring the kernel's feature-major bf16/f32 numerics."""
    xT = x.T
    h = kp["b1"] + kp["w1T"][:, 0:1] * xT[0:1, :]
    for k in range(1, xT.shape[0]):
        h = h + kp["w1T"][:, k:k + 1] * xT[k:k + 1, :]
    h = _elu(h)
    h = jnp.dot(kp["w2T"], h.astype(jnp.bfloat16), preferred_element_type=jnp.float32)
    h = _elu(h + kp["b2"])
    h = jnp.dot(kp["w3T"], h.astype(jnp.bfloat16), preferred_element_type=jnp.float32)
    h = _elu(h + kp["b3"])
    out = jnp.sum(h * kp["w4"], axis=0, keepdims=True) + kp["b4"]
    return out[0]


if __name__ == "__main__":
    key = jax.random.PRNGKey(0)
    kp_key, kx_key, kx2_key = jax.random.split(key, 3)

    INPUT_SIZE = 4              # fixed by _norm_matrix in the torch module
    OUTPUT_SIZE = 1             # required by x.reshape(x.size(0))

    params = init_params(kp_key, INPUT_SIZE, OUTPUT_SIZE)
    kparams = prepare_params(params)           # one-time weight transform

    # --- small batch: single grid step (block == full padded batch) ---
    B = 8
    x = jax.random.normal(kx_key, (B, INPUT_SIZE), dtype=jnp.float32)
    out = jax.block_until_ready(critic_forward(x, kparams))
    assert out.shape == (B,)

    # Tight check vs. a reference with identical (bf16 matmul, f32 acc) numerics.
    ref_mixed = critic_reference_mixed(x, kparams)
    assert jnp.allclose(out, ref_mixed, atol=1e-3, rtol=1e-3), (out, ref_mixed)
    # Loose check vs. exact-f32 torch semantics (bf16 weight quantization ~<1%).
    ref_f32 = critic_reference_f32(x, params)
    assert jnp.allclose(out, ref_f32, atol=1e-1, rtol=1e-1), (out, ref_f32)

    # --- larger batch: multi-step lane-dense grid (BM multiple of 128, padding) ---
    B2 = 300
    x2 = jax.random.normal(kx2_key, (B2, INPUT_SIZE), dtype=jnp.float32)
    out2 = jax.block_until_ready(critic_forward(x2, kparams))
    assert out2.shape == (B2,)
    assert jnp.allclose(out2, critic_reference_mixed(x2, kparams), atol=1e-3, rtol=1e-3)

    print("KERNEL_OK")
</pallas_src>

<mosaic_0001>
module attributes {stable_mosaic.version = 11 : i64} {
  func.func @critic_kernel(%arg0: i32, %arg1: memref<4x8xf32, #tpu.memory_space<vmem>>, %arg2: memref<256x4xf32, #tpu.memory_space<vmem>>, %arg3: memref<256x1xf32, #tpu.memory_space<vmem>>, %arg4: memref<256x256xbf16, #tpu.memory_space<vmem>>, %arg5: memref<256x1xf32, #tpu.memory_space<vmem>>, %arg6: memref<256x256xbf16, #tpu.memory_space<vmem>>, %arg7: memref<256x1xf32, #tpu.memory_space<vmem>>, %arg8: memref<256x1xf32, #tpu.memory_space<vmem>>, %arg9: memref<1x1xf32, #tpu.memory_space<vmem>>, %arg10: memref<1x8xf32, #tpu.memory_space<vmem>>) attributes {dimension_semantics = [#tpu.dimension_semantics<parallel>], iteration_bounds = array<i64: 1>, scalar_prefetch = 0 : i64, scratch_operands = 0 : i64, tpu.core_type = #tpu.core_type<tc>, window_params = [{transform_indices = @transform_0, window_bounds = array<i64: 4, 8>}, {pipeline_mode = #tpu.pipeline_mode<synchronous>, transform_indices = @transform_1, window_bounds = array<i64: 256, 4>}, {pipeline_mode = #tpu.pipeline_mode<synchronous>, transform_indices = @transform_2, window_bounds = array<i64: 256, 1>}, {pipeline_mode = #tpu.pipeline_mode<synchronous>, transform_indices = @transform_3, window_bounds = array<i64: 256, 256>}, {pipeline_mode = #tpu.pipeline_mode<synchronous>, transform_indices = @transform_4, window_bounds = array<i64: 256, 1>}, {pipeline_mode = #tpu.pipeline_mode<synchronous>, transform_indices = @transform_5, window_bounds = array<i64: 256, 256>}, {pipeline_mode = #tpu.pipeline_mode<synchronous>, transform_indices = @transform_6, window_bounds = array<i64: 256, 1>}, {pipeline_mode = #tpu.pipeline_mode<synchronous>, transform_indices = @transform_7, window_bounds = array<i64: 256, 1>}, {pipeline_mode = #tpu.pipeline_mode<synchronous>, transform_indices = @transform_8, window_bounds = array<i64: 1, 1>}, {transform_indices = @transform_9, window_bounds = array<i64: 1, 8>}]} {
    %c0 = arith.constant 0 : index
    %c0_0 = arith.constant 0 : index
    %0 = vector.load %arg1[%c0, %c0_0] : memref<4x8xf32, #tpu.memory_space<vmem>>, vector<4x8xf32>
    %c0_1 = arith.constant 0 : index
    %c0_2 = arith.constant 0 : index
    %1 = vector.load %arg2[%c0_1, %c0_2] : memref<256x4xf32, #tpu.memory_space<vmem>>, vector<256x4xf32>
    %c0_3 = arith.constant 0 : index
    %c0_4 = arith.constant 0 : index
    %2 = vector.load %arg3[%c0_3, %c0_4] : memref<256x1xf32, #tpu.memory_space<vmem>>, vector<256x1xf32>
    %3 = vector.extract_strided_slice %1 {offsets = [0, 0], sizes = [256, 1], strides = [1, 1]} : vector<256x4xf32> to vector<256x1xf32>
    %4 = vector.extract_strided_slice %0 {offsets = [0, 0], sizes = [1, 8], strides = [1, 1]} : vector<4x8xf32> to vector<1x8xf32>
    %5 = vector.broadcast %3 : vector<256x1xf32> to vector<256x8xf32>
    %6 = vector.broadcast %4 : vector<1x8xf32> to vector<256x8xf32>
    %7 = arith.mulf %5, %6 : vector<256x8xf32>
    %8 = vector.broadcast %2 : vector<256x1xf32> to vector<256x8xf32>
    %9 = arith.addf %8, %7 : vector<256x8xf32>
    %10 = vector.extract_strided_slice %1 {offsets = [0, 1], sizes = [256, 1], strides = [1, 1]} : vector<256x4xf32> to vector<256x1xf32>
    %11 = vector.extract_strided_slice %0 {offsets = [1, 0], sizes = [1, 8], strides = [1, 1]} : vector<4x8xf32> to vector<1x8xf32>
    %12 = vector.broadcast %10 : vector<256x1xf32> to vector<256x8xf32>
    %13 = vector.broadcast %11 : vector<1x8xf32> to vector<256x8xf32>
    %14 = arith.mulf %12, %13 : vector<256x8xf32>
    %15 = arith.addf %9, %14 : vector<256x8xf32>
    %16 = vector.extract_strided_slice %1 {offsets = [0, 2], sizes = [256, 1], strides = [1, 1]} : vector<256x4xf32> to vector<256x1xf32>
    %17 = vector.extract_strided_slice %0 {offsets = [2, 0], sizes = [1, 8], strides = [1, 1]} : vector<4x8xf32> to vector<1x8xf32>
    %18 = vector.broadcast %16 : vector<256x1xf32> to vector<256x8xf32>
    %19 = vector.broadcast %17 : vector<1x8xf32> to vector<256x8xf32>
    %20 = arith.mulf %18, %19 : vector<256x8xf32>
    %21 = arith.addf %15, %20 : vector<256x8xf32>
    %22 = vector.extract_strided_slice %1 {offsets = [0, 3], sizes = [256, 1], strides = [1, 1]} : vector<256x4xf32> to vector<256x1xf32>
    %23 = vector.extract_strided_slice %0 {offsets = [3, 0], sizes = [1, 8], strides = [1, 1]} : vector<4x8xf32> to vector<1x8xf32>
    %24 = vector.broadcast %22 : vector<256x1xf32> to vector<256x8xf32>
    %25 = vector.broadcast %23 : vector<1x8xf32> to vector<256x8xf32>
    %26 = arith.mulf %24, %25 : vector<256x8xf32>
    %27 = arith.addf %21, %26 : vector<256x8xf32>
    %cst = arith.constant 0.000000e+00 : f32
    %28 = vector.broadcast %cst : f32 to vector<256x8xf32>
    %29 = arith.cmpf ogt, %27, %28 : vector<256x8xf32>
    %cst_5 = arith.constant 0.000000e+00 : f32
    %30 = vector.broadcast %cst_5 : f32 to vector<256x8xf32>
    %31 = arith.minimumf %27, %30 : vector<256x8xf32>
    %32 = math.exp %31 : vector<256x8xf32>
    %cst_6 = arith.constant 1.000000e+00 : f32
    %33 = vector.broadcast %cst_6 : f32 to vector<256x8xf32>
    %34 = arith.subf %32, %33 : vector<256x8xf32>
    %35 = arith.select %29, %27, %34 : vector<256x8xi1>, vector<256x8xf32>
    %c0_7 = arith.constant 0 : index
    %c0_8 = arith.constant 0 : index
    %36 = vector.load %arg4[%c0_7, %c0_8] : memref<256x256xbf16, #tpu.memory_space<vmem>>, vector<256x256xbf16>
    %37 = arith.truncf %35 : vector<256x8xf32> to vector<256x8xbf16>
    %cst_9 = arith.constant dense<0.000000e+00> : vector<256x8xf32>
    %38 = tpu.matmul %36, %37, %cst_9 {dimension_numbers = #tpu.dot_dimension_numbers<[1], [0], [0], [1], [0, 0, 1, 1], [], []>} : vector<256x256xbf16>, vector<256x8xbf16>, vector<256x8xf32> -> vector<256x8xf32>
    %c0_10 = arith.constant 0 : index
    %c0_11 = arith.constant 0 : index
    %39 = vector.load %arg5[%c0_10, %c0_11] : memref<256x1xf32, #tpu.memory_space<vmem>>, vector<256x1xf32>
    %40 = vector.broadcast %39 : vector<256x1xf32> to vector<256x8xf32>
    %41 = arith.addf %38, %40 : vector<256x8xf32>
    %cst_12 = arith.constant 0.000000e+00 : f32
    %42 = vector.broadcast %cst_12 : f32 to vector<256x8xf32>
    %43 = arith.cmpf ogt, %41, %42 : vector<256x8xf32>
    %cst_13 = arith.constant 0.000000e+00 : f32
    %44 = vector.broadcast %cst_13 : f32 to vector<256x8xf32>
    %45 = arith.minimumf %41, %44 : vector<256x8xf32>
    %46 = math.exp %45 : vector<256x8xf32>
    %cst_14 = arith.constant 1.000000e+00 : f32
    %47 = vector.broadcast %cst_14 : f32 to vector<256x8xf32>
    %48 = arith.subf %46, %47 : vector<256x8xf32>
    %49 = arith.select %43, %41, %48 : vector<256x8xi1>, vector<256x8xf32>
    %c0_15 = arith.constant 0 : index
    %c0_16 = arith.constant 0 : index
    %50 = vector.load %arg6[%c0_15, %c0_16] : memref<256x256xbf16, #tpu.memory_space<vmem>>, vector<256x256xbf16>
    %51 = arith.truncf %49 : vector<256x8xf32> to vector<256x8xbf16>
    %cst_17 = arith.constant dense<0.000000e+00> : vector<256x8xf32>
    %52 = tpu.matmul %50, %51, %cst_17 {dimension_numbers = #tpu.dot_dimension_numbers<[1], [0], [0], [1], [0, 0, 1, 1], [], []>} : vector<256x256xbf16>, vector<256x8xbf16>, vector<256x8xf32> -> vector<256x8xf32>
    %c0_18 = arith.constant 0 : index
    %c0_19 = arith.constant 0 : index
    %53 = vector.load %arg7[%c0_18, %c0_19] : memref<256x1xf32, #tpu.memory_space<vmem>>, vector<256x1xf32>
    %54 = vector.broadcast %53 : vector<256x1xf32> to vector<256x8xf32>
    %55 = arith.addf %52, %54 : vector<256x8xf32>
    %cst_20 = arith.constant 0.000000e+00 : f32
    %56 = vector.broadcast %cst_20 : f32 to vector<256x8xf32>
    %57 = arith.cmpf ogt, %55, %56 : vector<256x8xf32>
    %cst_21 = arith.constant 0.000000e+00 : f32
    %58 = vector.broadcast %cst_21 : f32 to vector<256x8xf32>
    %59 = arith.minimumf %55, %58 : vector<256x8xf32>
    %60 = math.exp %59 : vector<256x8xf32>
    %cst_22 = arith.constant 1.000000e+00 : f32
    %61 = vector.broadcast %cst_22 : f32 to vector<256x8xf32>
    %62 = arith.subf %60, %61 : vector<256x8xf32>
    %63 = arith.select %57, %55, %62 : vector<256x8xi1>, vector<256x8xf32>
    %c0_23 = arith.constant 0 : index
    %c0_24 = arith.constant 0 : index
    %64 = vector.load %arg8[%c0_23, %c0_24] : memref<256x1xf32, #tpu.memory_space<vmem>>, vector<256x1xf32>
    %65 = vector.broadcast %64 : vector<256x1xf32> to vector<256x8xf32>
    %66 = arith.mulf %63, %65 : vector<256x8xf32>
    %cst_25 = arith.constant dense<0.000000e+00> : vector<8xf32>
    %67 = vector.multi_reduction <add>, %66, %cst_25 [0] : vector<256x8xf32> to vector<8xf32>
    %68 = vector.shape_cast %67 : vector<8xf32> to vector<1x8xf32>
    %c0_26 = arith.constant 0 : index
    %c0_27 = arith.constant 0 : index
    %69 = vector.load %arg9[%c0_26, %c0_27] : memref<1x1xf32, #tpu.memory_space<vmem>>, vector<1x1xf32>
    %70 = vector.broadcast %69 : vector<1x1xf32> to vector<1x8xf32>
    %71 = arith.addf %68, %70 : vector<1x8xf32>
    %c0_28 = arith.constant 0 : index
    %c0_29 = arith.constant 0 : index
    %72 = vector.load %arg10[%c0_28, %c0_29] : memref<1x8xf32, #tpu.memory_space<vmem>>, vector<1x8xf32>
    tpu.vector_store %arg10[%c0_28, %c0_29], %71 {strides = array<i32>} : memref<1x8xf32, #tpu.memory_space<vmem>>, vector<1x8xf32>,
    return
  }
  func.func @transform_0(%arg0: i32) -> (i32, i32) {
    %c0_i32 = arith.constant 0 : i32
    %c0_i32_0 = arith.constant 0 : i32
    return %c0_i32, %arg0 : i32, i32
  }
  func.func @transform_1(%arg0: i32) -> (i32, i32) {
    %c0_i32 = arith.constant 0 : i32
    %c0_i32_0 = arith.constant 0 : i32
    %c0_i32_1 = arith.constant 0 : i32
    return %c0_i32, %c0_i32_0 : i32, i32
  }
  func.func @transform_2(%arg0: i32) -> (i32, i32) {
    %c0_i32 = arith.constant 0 : i32
    %c0_i32_0 = arith.constant 0 : i32
    %c0_i32_1 = arith.constant 0 : i32
    return %c0_i32, %c0_i32_0 : i32, i32
  }
  func.func @transform_3(%arg0: i32) -> (i32, i32) {
    %c0_i32 = arith.constant 0 : i32
    %c0_i32_0 = arith.constant 0 : i32
    %c0_i32_1 = arith.constant 0 : i32
    return %c0_i32, %c0_i32_0 : i32, i32
  }
  func.func @transform_4(%arg0: i32) -> (i32, i32) {
    %c0_i32 = arith.constant 0 : i32
    %c0_i32_0 = arith.constant 0 : i32
    %c0_i32_1 = arith.constant 0 : i32
    return %c0_i32, %c0_i32_0 : i32, i32
  }
  func.func @transform_5(%arg0: i32) -> (i32, i32) {
    %c0_i32 = arith.constant 0 : i32
    %c0_i32_0 = arith.constant 0 : i32
    %c0_i32_1 = arith.constant 0 : i32
    return %c0_i32, %c0_i32_0 : i32, i32
  }
  func.func @transform_6(%arg0: i32) -> (i32, i32) {
    %c0_i32 = arith.constant 0 : i32
    %c0_i32_0 = arith.constant 0 : i32
    %c0_i32_1 = arith.constant 0 : i32
    return %c0_i32, %c0_i32_0 : i32, i32
  }
  func.func @transform_7(%arg0: i32) -> (i32, i32) {
    %c0_i32 = arith.constant 0 : i32
    %c0_i32_0 = arith.constant 0 : i32
    %c0_i32_1 = arith.constant 0 : i32
    return %c0_i32, %c0_i32_0 : i32, i32
  }
  func.func @transform_8(%arg0: i32) -> (i32, i32) {
    %c0_i32 = arith.constant 0 : i32
    %c0_i32_0 = arith.constant 0 : i32
    %c0_i32_1 = arith.constant 0 : i32
    return %c0_i32, %c0_i32_0 : i32, i32
  }
  func.func @transform_9(%arg0: i32) -> (i32, i32) {
    %c0_i32 = arith.constant 0 : i32
    %c0_i32_0 = arith.constant 0 : i32
    return %c0_i32, %arg0 : i32, i32
  }
}

</mosaic_0001>

<llo_original>
// kernel: tpu_custom_call.1
$region0: #{tpu_custom_call.1}
  #allocation0 [shape = 'u32[]', space=smem, size = 0x4, offset = 0x4, fixed_abs, tag = 'smem constant byte address 0x4 - core index']
  #allocation1 [shape = 'u32[72,128]{1,0:T(1,128)}', space=vmem, size = 0x9000, scoped, tag = 'internal scratch']
  #allocation2 [shape = 'f32[1,1]{1,0:T(1,128)S(1)}', space=vmem, size = 0x200, scoped, tag = 'scoped memory for tpu_custom_call.1']
  %s0 = inlined_call_operand.vmem [shape: f32[4,8], index: 0, kind: input, shape index: {}]
  %s1 = inlined_call_operand.vmem [shape: f32[256,4], index: 1, kind: input, shape index: {}]
  %s2 = inlined_call_operand.vmem [shape: f32[256,1], index: 2, kind: input, shape index: {}]
  %s3 = inlined_call_operand.vmem [shape: bf16[256,256], index: 3, kind: input, shape index: {}]
  %s4 = inlined_call_operand.vmem [shape: f32[256,1], index: 4, kind: input, shape index: {}]
  %s5 = inlined_call_operand.vmem [shape: bf16[256,256], index: 5, kind: input, shape index: {}]
  %s6 = inlined_call_operand.vmem [shape: f32[256,1], index: 6, kind: input, shape index: {}]
  %s7 = inlined_call_operand.vmem [shape: f32[256,1], index: 7, kind: input, shape index: {}]
  %s8 = inlined_call_operand.<no memory space> [shape: f32[1,1], index: 8, kind: input, shape index: {}]
  %s9 = inlined_call_operand.hbm [shape: f32[1,8], index: 9, kind: output, shape index: {}]
  %s10 = sld [smem:[#allocation0]]
  $region46: #{tpu_custom_call.1} parent=0
    _
  %s12 = ssub.s32 1, %s10
  %s13 = scalar_select 0, %s12, %s10
  %v14 = vstv %s8
  %15 = vst [vmem:[#allocation2] sm:$0x1] %v14
  $region1: #{tpu_custom_call.1} parent=0
    #allocation3 [shape = 'u8[512]{0}', space=vmem, size = 0x400, scoped, tag = 'output window, operand 0, single buffered']
    #allocation4 [shape = 's32[1]{0}', space=sflag, size = 0x4, scoped, tag = 'scoped memory for tpu_custom_call.1']
    %16 = vsyncpa [#allocation4], 0
    // Predicated region
    $region2: #{tpu_custom_call.1} parent=1 // pred_check
      _
    $region3: #{tpu_custom_call.1} parent=1 // pred_check_branch
      %18 = sbr.rel (0) target = $region5
    $region4: #{tpu_custom_call.1} parent=1 // pred_region
      _
    $region5: #{tpu_custom_call.1} parent=1 // pred_fallthru
      _
    // Predicated region
    $region6: #{tpu_custom_call.1} parent=1 // pred_check
      _
    $region7: #{tpu_custom_call.1} parent=1 // pred_check_branch
      %20 = sbr.rel (0) target = $region9
    $region8: #{tpu_custom_call.1} parent=1 // pred_region
      _
    $region9: #{tpu_custom_call.1} parent=1 // pred_fallthru
      _
    // Predicated region
    $region10: #{tpu_custom_call.1} parent=1 // pred_check
      _
    $region11: #{tpu_custom_call.1} parent=1 // pred_check_branch
      %22 = sbr.rel (0) target = $region13
    $region12: #{tpu_custom_call.1} parent=1 // pred_region
      _
    $region13: #{tpu_custom_call.1} parent=1 // pred_fallthru
      _
    // Predicated region
    $region14: #{tpu_custom_call.1} parent=1 // pred_check
      _
    $region15: #{tpu_custom_call.1} parent=1 // pred_check_branch
      %24 = sbr.rel (0) target = $region17
    $region16: #{tpu_custom_call.1} parent=1 // pred_region
      _
    $region17: #{tpu_custom_call.1} parent=1 // pred_fallthru
      _
    // Predicated region
    $region18: #{tpu_custom_call.1} parent=1 // pred_check
      _
    $region19: #{tpu_custom_call.1} parent=1 // pred_check_branch
      %26 = sbr.rel (0) target = $region21
    $region20: #{tpu_custom_call.1} parent=1 // pred_region
      _
    $region21: #{tpu_custom_call.1} parent=1 // pred_fallthru
      _
    // Predicated region
    $region22: #{tpu_custom_call.1} parent=1 // pred_check
      _
    $region23: #{tpu_custom_call.1} parent=1 // pred_check_branch
      %28 = sbr.rel (0) target = $region25
    $region24: #{tpu_custom_call.1} parent=1 // pred_region
      _
    $region25: #{tpu_custom_call.1} parent=1 // pred_fallthru
      _
    // Predicated region
    $region26: #{tpu_custom_call.1} parent=1 // pred_check
      _
    $region27: #{tpu_custom_call.1} parent=1 // pred_check_branch
      %30 = sbr.rel (0) target = $region29
    $region28: #{tpu_custom_call.1} parent=1 // pred_region
      _
    $region29: #{tpu_custom_call.1} parent=1 // pred_fallthru
      _
    // Predicated region
    $region30: #{tpu_custom_call.1} parent=1 // pred_check
      _
    $region31: #{tpu_custom_call.1} parent=1 // pred_check_branch
      %32 = sbr.rel (0) target = $region33
    $region32: #{tpu_custom_call.1} parent=1 // pred_region
      _
    $region33: #{tpu_custom_call.1} parent=1 // pred_fallthru
      _
    // Predicated region
    $region34: #{tpu_custom_call.1} parent=1 // pred_check
      _
    $region35: #{tpu_custom_call.1} parent=1 // pred_check_branch
      %34 = sbr.rel (0) target = $region37
    $region36: #{tpu_custom_call.1} parent=1 // pred_region
      _
    $region37: #{tpu_custom_call.1} parent=1 // pred_fallthru
      _
    %v35 = vld [vmem:[%s0] sm:$0xf]
    %v36 = vld [vmem:[%s1] sm:$0xff]
    %v37 = vld [vmem:[%s1 + $0x8] sm:$0xff]
    %v38 = vld [vmem:[%s1 + $0x10] sm:$0xff]
    %v39 = vld [vmem:[%s1 + $0x18] sm:$0xff]
    %v40 = vld [vmem:[%s1 + $0x20] sm:$0xff]
    %v41 = vld [vmem:[%s1 + $0x28] sm:$0xff]
    %v42 = vld [vmem:[%s1 + $0x30] sm:$0xff]
    %v43 = vld [vmem:[%s1 + $0x38] sm:$0xff]
    %v44 = vld [vmem:[%s1 + $0x40] sm:$0xff]
    %v45 = vld [vmem:[%s1 + $0x48] sm:$0xff]
    %v46 = vld [vmem:[%s1 + $0x50] sm:$0xff]
    %v47 = vld [vmem:[%s1 + $0x58] sm:$0xff]
    %v48 = vld [vmem:[%s1 + $0x60] sm:$0xff]
    %v49 = vld [vmem:[%s1 + $0x68] sm:$0xff]
    %v50 = vld [vmem:[%s1 + $0x70] sm:$0xff]
    %v51 = vld [vmem:[%s1 + $0x78] sm:$0xff]
    %v52 = vld [vmem:[%s1 + $0x80] sm:$0xff]
    %v53 = vld [vmem:[%s1 + $0x88] sm:$0xff]
    %v54 = vld [vmem:[%s1 + $0x90] sm:$0xff]
    %v55 = vld [vmem:[%s1 + $0x98] sm:$0xff]
    %v56 = vld [vmem:[%s1 + $0xa0] sm:$0xff]
    %v57 = vld [vmem:[%s1 + $0xa8] sm:$0xff]
    %v58 = vld [vmem:[%s1 + $0xb0] sm:$0xff]
    %v59 = vld [vmem:[%s1 + $0xb8] sm:$0xff]
    %v60 = vld [vmem:[%s1 + $0xc0] sm:$0xff]
    %v61 = vld [vmem:[%s1 + $0xc8] sm:$0xff]
    %v62 = vld [vmem:[%s1 + $0xd0] sm:$0xff]
    %v63 = vld [vmem:[%s1 + $0xd8] sm:$0xff]
    %v64 = vld [vmem:[%s1 + $0xe0] sm:$0xff]
    %v65 = vld [vmem:[%s1 + $0xe8] sm:$0xff]
    %v66 = vld [vmem:[%s1 + $0xf0] sm:$0xff]
    %v67 = vld [vmem:[%s1 + $0xf8] sm:$0xff]
    %v68 = vld [vmem:[%s2] sm:$0xff]
    %v69 = vld [vmem:[%s2 + $0x8] sm:$0xff]
    %v70 = vld [vmem:[%s2 + $0x10] sm:$0xff]
    %v71 = vld [vmem:[%s2 + $0x18] sm:$0xff]
    %v72 = vld [vmem:[%s2 + $0x20] sm:$0xff]
    %v73 = vld [vmem:[%s2 + $0x28] sm:$0xff]
    %v74 = vld [vmem:[%s2 + $0x30] sm:$0xff]
    %v75 = vld [vmem:[%s2 + $0x38] sm:$0xff]
    %v76 = vld [vmem:[%s2 + $0x40] sm:$0xff]
    %v77 = vld [vmem:[%s2 + $0x48] sm:$0xff]
    %v78 = vld [vmem:[%s2 + $0x50] sm:$0xff]
    %v79 = vld [vmem:[%s2 + $0x58] sm:$0xff]
    %v80 = vld [vmem:[%s2 + $0x60] sm:$0xff]
    %v81 = vld [vmem:[%s2 + $0x68] sm:$0xff]
    %v82 = vld [vmem:[%s2 + $0x70] sm:$0xff]
    %v83 = vld [vmem:[%s2 + $0x78] sm:$0xff]
    %v84 = vld [vmem:[%s2 + $0x80] sm:$0xff]
    %v85 = vld [vmem:[%s2 + $0x88] sm:$0xff]
    %v86 = vld [vmem:[%s2 + $0x90] sm:$0xff]
    %v87 = vld [vmem:[%s2 + $0x98] sm:$0xff]
    %v88 = vld [vmem:[%s2 + $0xa0] sm:$0xff]
    %v89 = vld [vmem:[%s2 + $0xa8] sm:$0xff]
    %v90 = vld [vmem:[%s2 + $0xb0] sm:$0xff]
    %v91 = vld [vmem:[%s2 + $0xb8] sm:$0xff]
    %v92 = vld [vmem:[%s2 + $0xc0] sm:$0xff]
    %v93 = vld [vmem:[%s2 + $0xc8] sm:$0xff]
    %v94 = vld [vmem:[%s2 + $0xd0] sm:$0xff]
    %v95 = vld [vmem:[%s2 + $0xd8] sm:$0xff]
    %v96 = vld [vmem:[%s2 + $0xe0] sm:$0xff]
    %v97 = vld [vmem:[%s2 + $0xe8] sm:$0xff]
    %v98 = vld [vmem:[%s2 + $0xf0] sm:$0xff]
    %v99 = vld [vmem:[%s2 + $0xf8] sm:$0xff]
    %101 = vset.pattern.permute.xlu0 0
    %102 = vperm.xlu0 %101, %v36
    %v103 = vpop.permute.xlu0 %102
    %106 = vset.pattern.permute.xlu0 0
    %107 = vperm.xlu0 %106, %v37
    %v108 = vpop.permute.xlu0 %107
    %111 = vset.pattern.permute.xlu0 0
    %112 = vperm.xlu0 %111, %v38
    %v113 = vpop.permute.xlu0 %112
    %116 = vset.pattern.permute.xlu0 0
    %117 = vperm.xlu0 %116, %v39
    %v118 = vpop.permute.xlu0 %117
    %121 = vset.pattern.permute.xlu0 0
    %122 = vperm.xlu0 %121, %v40
    %v123 = vpop.permute.xlu0 %122
    %126 = vset.pattern.permute.xlu0 0
    %127 = vperm.xlu0 %126, %v41
    %v128 = vpop.permute.xlu0 %127
    %131 = vset.pattern.permute.xlu0 0
    %132 = vperm.xlu0 %131, %v42
    %v133 = vpop.permute.xlu0 %132
    %136 = vset.pattern.permute.xlu0 0
    %137 = vperm.xlu0 %136, %v43
    %v138 = vpop.permute.xlu0 %137
    %141 = vset.pattern.permute.xlu0 0
    %142 = vperm.xlu0 %141, %v44
    %v143 = vpop.permute.xlu0 %142
    %146 = vset.pattern.permute.xlu0 0
    %147 = vperm.xlu0 %146, %v45
    %v148 = vpop.permute.xlu0 %147
    %151 = vset.pattern.permute.xlu0 0
    %152 = vperm.xlu0 %151, %v46
    %v153 = vpop.permute.xlu0 %152
    %156 = vset.pattern.permute.xlu0 0
    %157 = vperm.xlu0 %156, %v47
    %v158 = vpop.permute.xlu0 %157
    %161 = vset.pattern.permute.xlu0 0
    %162 = vperm.xlu0 %161, %v48
    %v163 = vpop.permute.xlu0 %162
    %166 = vset.pattern.permute.xlu0 0
    %167 = vperm.xlu0 %166, %v49
    %v168 = vpop.permute.xlu0 %167
    %171 = vset.pattern.permute.xlu0 0
    %172 = vperm.xlu0 %171, %v50
    %v173 = vpop.permute.xlu0 %172
    %176 = vset.pattern.permute.xlu0 0
    %177 = vperm.xlu0 %176, %v51
    %v178 = vpop.permute.xlu0 %177
    %181 = vset.pattern.permute.xlu0 0
    %182 = vperm.xlu0 %181, %v52
    %v183 = vpop.permute.xlu0 %182
    %186 = vset.pattern.permute.xlu0 0
    %187 = vperm.xlu0 %186, %v53
    %v188 = vpop.permute.xlu0 %187
    %191 = vset.pattern.permute.xlu0 0
    %192 = vperm.xlu0 %191, %v54
    %v193 = vpop.permute.xlu0 %192
    %196 = vset.pattern.permute.xlu0 0
    %197 = vperm.xlu0 %196, %v55
    %v198 = vpop.permute.xlu0 %197
    %201 = vset.pattern.permute.xlu0 0
    %202 = vperm.xlu0 %201, %v56
    %v203 = vpop.permute.xlu0 %202
    %206 = vset.pattern.permute.xlu0 0
    %207 = vperm.xlu0 %206, %v57
    %v208 = vpop.permute.xlu0 %207
    %211 = vset.pattern.permute.xlu0 0
    %212 = vperm.xlu0 %211, %v58
    %v213 = vpop.permute.xlu0 %212
    %216 = vset.pattern.permute.xlu0 0
    %217 = vperm.xlu0 %216, %v59
    %v218 = vpop.permute.xlu0 %217
    %221 = vset.pattern.permute.xlu0 0
    %222 = vperm.xlu0 %221, %v60
    %v223 = vpop.permute.xlu0 %222
    %226 = vset.pattern.permute.xlu0 0
    %227 = vperm.xlu0 %226, %v61
    %v228 = vpop.permute.xlu0 %227
    %231 = vset.pattern.permute.xlu0 0
    %232 = vperm.xlu0 %231, %v62
    %v233 = vpop.permute.xlu0 %232
    %236 = vset.pattern.permute.xlu0 0
    %237 = vperm.xlu0 %236, %v63
    %v238 = vpop.permute.xlu0 %237
    %241 = vset.pattern.permute.xlu0 0
    %242 = vperm.xlu0 %241, %v64
    %v243 = vpop.permute.xlu0 %242
    %246 = vset.pattern.permute.xlu0 0
    %247 = vperm.xlu0 %246, %v65
    %v248 = vpop.permute.xlu0 %247
    %251 = vset.pattern.permute.xlu0 0
    %252 = vperm.xlu0 %251, %v66
    %v253 = vpop.permute.xlu0 %252
    %256 = vset.pattern.permute.xlu0 0
    %257 = vperm.xlu0 %256, %v67
    %v258 = vpop.permute.xlu0 %257
    %v260 = vperm.slane %v35, 0
    %v261 = vmul.f32 %v103, %v260
    %v262 = vmul.f32 %v108, %v260
    %v263 = vmul.f32 %v113, %v260
    %v264 = vmul.f32 %v118, %v260
    %v265 = vmul.f32 %v123, %v260
    %v266 = vmul.f32 %v128, %v260
    %v267 = vmul.f32 %v133, %v260
    %v268 = vmul.f32 %v138, %v260
    %v269 = vmul.f32 %v143, %v260
    %v270 = vmul.f32 %v148, %v260
    %v271 = vmul.f32 %v153, %v260
    %v272 = vmul.f32 %v158, %v260
    %v273 = vmul.f32 %v163, %v260
    %v274 = vmul.f32 %v168, %v260
    %v275 = vmul.f32 %v173, %v260
    %v276 = vmul.f32 %v178, %v260
    %v277 = vmul.f32 %v183, %v260
    %v278 = vmul.f32 %v188, %v260
    %v279 = vmul.f32 %v193, %v260
    %v280 = vmul.f32 %v198, %v260
    %v281 = vmul.f32 %v203, %v260
    %v282 = vmul.f32 %v208, %v260
    %v283 = vmul.f32 %v213, %v260
    %v284 = vmul.f32 %v218, %v260
    %v285 = vmul.f32 %v223, %v260
    %v286 = vmul.f32 %v228, %v260
    %v287 = vmul.f32 %v233, %v260
    %v288 = vmul.f32 %v238, %v260
    %v289 = vmul.f32 %v243, %v260
    %v290 = vmul.f32 %v248, %v260
    %v291 = vmul.f32 %v253, %v260
    %v292 = vmul.f32 %v258, %v260
    %294 = vset.pattern.permute.xlu0 0
    %295 = vperm.xlu0 %294, %v68
    %v296 = vpop.permute.xlu0 %295
    %299 = vset.pattern.permute.xlu0 0
    %300 = vperm.xlu0 %299, %v69
    %v301 = vpop.permute.xlu0 %300
    %304 = vset.pattern.permute.xlu0 0
    %305 = vperm.xlu0 %304, %v70
    %v306 = vpop.permute.xlu0 %305
    %309 = vset.pattern.permute.xlu0 0
    %310 = vperm.xlu0 %309, %v71
    %v311 = vpop.permute.xlu0 %310
    %314 = vset.pattern.permute.xlu0 0
    %315 = vperm.xlu0 %314, %v72
    %v316 = vpop.permute.xlu0 %315
    %319 = vset.pattern.permute.xlu0 0
    %320 = vperm.xlu0 %319, %v73
    %v321 = vpop.permute.xlu0 %320
    %324 = vset.pattern.permute.xlu0 0
    %325 = vperm.xlu0 %324, %v74
    %v326 = vpop.permute.xlu0 %325
    %329 = vset.pattern.permute.xlu0 0
    %330 = vperm.xlu0 %329, %v75
    %v331 = vpop.permute.xlu0 %330
    %334 = vset.pattern.permute.xlu0 0
    %335 = vperm.xlu0 %334, %v76
    %v336 = vpop.permute.xlu0 %335
    %339 = vset.pattern.permute.xlu0 0
    %340 = vperm.xlu0 %339, %v77
    %v341 = vpop.permute.xlu0 %340
    %344 = vset.pattern.permute.xlu0 0
    %345 = vperm.xlu0 %344, %v78
    %v346 = vpop.permute.xlu0 %345
    %349 = vset.pattern.permute.xlu0 0
    %350 = vperm.xlu0 %349, %v79
    %v351 = vpop.permute.xlu0 %350
    %354 = vset.pattern.permute.xlu0 0
    %355 = vperm.xlu0 %354, %v80
    %v356 = vpop.permute.xlu0 %355
    %359 = vset.pattern.permute.xlu0 0
    %360 = vperm.xlu0 %359, %v81
    %v361 = vpop.permute.xlu0 %360
    %364 = vset.pattern.permute.xlu0 0
    %365 = vperm.xlu0 %364, %v82
    %v366 = vpop.permute.xlu0 %365
    %369 = vset.pattern.permute.xlu0 0
    %370 = vperm.xlu0 %369, %v83
    %v371 = vpop.permute.xlu0 %370
    %374 = vset.pattern.permute.xlu0 0
    %375 = vperm.xlu0 %374, %v84
    %v376 = vpop.permute.xlu0 %375
    %379 = vset.pattern.permute.xlu0 0
    %380 = vperm.xlu0 %379, %v85
    %v381 = vpop.permute.xlu0 %380
    %384 = vset.pattern.permute.xlu0 0
    %385 = vperm.xlu0 %384, %v86
    %v386 = vpop.permute.xlu0 %385
    %389 = vset.pattern.permute.xlu0 0
    %390 = vperm.xlu0 %389, %v87
    %v391 = vpop.permute.xlu0 %390
    %394 = vset.pattern.permute.xlu0 0
    %395 = vperm.xlu0 %394, %v88
    %v396 = vpop.permute.xlu0 %395
    %399 = vset.pattern.permute.xlu0 0
    %400 = vperm.xlu0 %399, %v89
    %v401 = vpop.permute.xlu0 %400
    %404 = vset.pattern.permute.xlu0 0
    %405 = vperm.xlu0 %404, %v90
    %v406 = vpop.permute.xlu0 %405
    %409 = vset.pattern.permute.xlu0 0
    %410 = vperm.xlu0 %409, %v91
    %v411 = vpop.permute.xlu0 %410
    %414 = vset.pattern.permute.xlu0 0
    %415 = vperm.xlu0 %414, %v92
    %v416 = vpop.permute.xlu0 %415
    %419 = vset.pattern.permute.xlu0 0
    %420 = vperm.xlu0 %419, %v93
    %v421 = vpop.permute.xlu0 %420
    %424 = vset.pattern.permute.xlu0 0
    %425 = vperm.xlu0 %424, %v94
    %v426 = vpop.permute.xlu0 %425
    %429 = vset.pattern.permute.xlu0 0
    %430 = vperm.xlu0 %429, %v95
    %v431 = vpop.permute.xlu0 %430
    %434 = vset.pattern.permute.xlu0 0
    %435 = vperm.xlu0 %434, %v96
    %v436 = vpop.permute.xlu0 %435
    %439 = vset.pattern.permute.xlu0 0
    %440 = vperm.xlu0 %439, %v97
    %v441 = vpop.permute.xlu0 %440
    %444 = vset.pattern.permute.xlu0 0
    %445 = vperm.xlu0 %444, %v98
    %v446 = vpop.permute.xlu0 %445
    %449 = vset.pattern.permute.xlu0 0
    %450 = vperm.xlu0 %449, %v99
    %v451 = vpop.permute.xlu0 %450
    %v453 = vadd.f32 %v296, %v261
    %v454 = vadd.f32 %v301, %v262
    %v455 = vadd.f32 %v306, %v263
    %v456 = vadd.f32 %v311, %v264
    %v457 = vadd.f32 %v316, %v265
    %v458 = vadd.f32 %v321, %v266
    %v459 = vadd.f32 %v326, %v267
    %v460 = vadd.f32 %v331, %v268
    %v461 = vadd.f32 %v336, %v269
    %v462 = vadd.f32 %v341, %v270
    %v463 = vadd.f32 %v346, %v271
    %v464 = vadd.f32 %v351, %v272
    %v465 = vadd.f32 %v356, %v273
    %v466 = vadd.f32 %v361, %v274
    %v467 = vadd.f32 %v366, %v275
    %v468 = vadd.f32 %v371, %v276
    %v469 = vadd.f32 %v376, %v277
    %v470 = vadd.f32 %v381, %v278
    %v471 = vadd.f32 %v386, %v279
    %v472 = vadd.f32 %v391, %v280
    %v473 = vadd.f32 %v396, %v281
    %v474 = vadd.f32 %v401, %v282
    %v475 = vadd.f32 %v406, %v283
    %v476 = vadd.f32 %v411, %v284
    %v477 = vadd.f32 %v416, %v285
    %v478 = vadd.f32 %v421, %v286
    %v479 = vadd.f32 %v426, %v287
    %v480 = vadd.f32 %v431, %v288
    %v481 = vadd.f32 %v436, %v289
    %v482 = vadd.f32 %v441, %v290
    %v483 = vadd.f32 %v446, %v291
    %v484 = vadd.f32 %v451, %v292
    %485 = vset.pattern.permute.xlu0 1
    %486 = vperm.xlu0 %485, %v36
    %v487 = vpop.permute.xlu0 %486
    %489 = vset.pattern.permute.xlu0 1
    %490 = vperm.xlu0 %489, %v37
    %v491 = vpop.permute.xlu0 %490
    %493 = vset.pattern.permute.xlu0 1
    %494 = vperm.xlu0 %493, %v38
    %v495 = vpop.permute.xlu0 %494
    %497 = vset.pattern.permute.xlu0 1
    %498 = vperm.xlu0 %497, %v39
    %v499 = vpop.permute.xlu0 %498
    %501 = vset.pattern.permute.xlu0 1
    %502 = vperm.xlu0 %501, %v40
    %v503 = vpop.permute.xlu0 %502
    %505 = vset.pattern.permute.xlu0 1
    %506 = vperm.xlu0 %505, %v41
    %v507 = vpop.permute.xlu0 %506
    %509 = vset.pattern.permute.xlu0 1
    %510 = vperm.xlu0 %509, %v42
    %v511 = vpop.permute.xlu0 %510
    %513 = vset.pattern.permute.xlu0 1
    %514 = vperm.xlu0 %513, %v43
    %v515 = vpop.permute.xlu0 %514
    %517 = vset.pattern.permute.xlu0 1
    %518 = vperm.xlu0 %517, %v44
    %v519 = vpop.permute.xlu0 %518
    %521 = vset.pattern.permute.xlu0 1
    %522 = vperm.xlu0 %521, %v45
    %v523 = vpop.permute.xlu0 %522
    %525 = vset.pattern.permute.xlu0 1
    %526 = vperm.xlu0 %525, %v46
    %v527 = vpop.permute.xlu0 %526
    %529 = vset.pattern.permute.xlu0 1
    %530 = vperm.xlu0 %529, %v47
    %v531 = vpop.permute.xlu0 %530
    %533 = vset.pattern.permute.xlu0 1
    %534 = vperm.xlu0 %533, %v48
    %v535 = vpop.permute.xlu0 %534
    %537 = vset.pattern.permute.xlu0 1
    %538 = vperm.xlu0 %537, %v49
    %v539 = vpop.permute.xlu0 %538
    %541 = vset.pattern.permute.xlu0 1
    %542 = vperm.xlu0 %541, %v50
    %v543 = vpop.permute.xlu0 %542
    %545 = vset.pattern.permute.xlu0 1
    %546 = vperm.xlu0 %545, %v51
    %v547 = vpop.permute.xlu0 %546
    %549 = vset.pattern.permute.xlu0 1
    %550 = vperm.xlu0 %549, %v52
    %v551 = vpop.permute.xlu0 %550
    %553 = vset.pattern.permute.xlu0 1
    %554 = vperm.xlu0 %553, %v53
    %v555 = vpop.permute.xlu0 %554
    %557 = vset.pattern.permute.xlu0 1
    %558 = vperm.xlu0 %557, %v54
    %v559 = vpop.permute.xlu0 %558
    %561 = vset.pattern.permute.xlu0 1
    %562 = vperm.xlu0 %561, %v55
    %v563 = vpop.permute.xlu0 %562
    %565 = vset.pattern.permute.xlu0 1
    %566 = vperm.xlu0 %565, %v56
    %v567 = vpop.permute.xlu0 %566
    %569 = vset.pattern.permute.xlu0 1
    %570 = vperm.xlu0 %569, %v57
    %v571 = vpop.permute.xlu0 %570
    %573 = vset.pattern.permute.xlu0 1
    %574 = vperm.xlu0 %573, %v58
    %v575 = vpop.permute.xlu0 %574
    %577 = vset.pattern.permute.xlu0 1
    %578 = vperm.xlu0 %577, %v59
    %v579 = vpop.permute.xlu0 %578
    %581 = vset.pattern.permute.xlu0 1
    %582 = vperm.xlu0 %581, %v60
    %v583 = vpop.permute.xlu0 %582
    %585 = vset.pattern.permute.xlu0 1
    %586 = vperm.xlu0 %585, %v61
    %v587 = vpop.permute.xlu0 %586
    %589 = vset.pattern.permute.xlu0 1
    %590 = vperm.xlu0 %589, %v62
    %v591 = vpop.permute.xlu0 %590
    %593 = vset.pattern.permute.xlu0 1
    %594 = vperm.xlu0 %593, %v63
    %v595 = vpop.permute.xlu0 %594
    %597 = vset.pattern.permute.xlu0 1
    %598 = vperm.xlu0 %597, %v64
    %v599 = vpop.permute.xlu0 %598
    %601 = vset.pattern.permute.xlu0 1
    %602 = vperm.xlu0 %601, %v65
    %v603 = vpop.permute.xlu0 %602
    %605 = vset.pattern.permute.xlu0 1
    %606 = vperm.xlu0 %605, %v66
    %v607 = vpop.permute.xlu0 %606
    %609 = vset.pattern.permute.xlu0 1
    %610 = vperm.xlu0 %609, %v67
    %v611 = vpop.permute.xlu0 %610
    %v613 = vperm.slane %v35, 1
    %v614 = vmul.f32 %v487, %v613
    %v615 = vmul.f32 %v491, %v613
    %v616 = vmul.f32 %v495, %v613
    %v617 = vmul.f32 %v499, %v613
    %v618 = vmul.f32 %v503, %v613
    %v619 = vmul.f32 %v507, %v613
    %v620 = vmul.f32 %v511, %v613
    %v621 = vmul.f32 %v515, %v613
    %v622 = vmul.f32 %v519, %v613
    %v623 = vmul.f32 %v523, %v613
    %v624 = vmul.f32 %v527, %v613
    %v625 = vmul.f32 %v531, %v613
    %v626 = vmul.f32 %v535, %v613
    %v627 = vmul.f32 %v539, %v613
    %v628 = vmul.f32 %v543, %v613
    %v629 = vmul.f32 %v547, %v613
    %v630 = vmul.f32 %v551, %v613
    %v631 = vmul.f32 %v555, %v613
    %v632 = vmul.f32 %v559, %v613
    %v633 = vmul.f32 %v563, %v613
    %v634 = vmul.f32 %v567, %v613
    %v635 = vmul.f32 %v571, %v613
    %v636 = vmul.f32 %v575, %v613
    %v637 = vmul.f32 %v579, %v613
    %v638 = vmul.f32 %v583, %v613
    %v639 = vmul.f32 %v587, %v613
    %v640 = vmul.f32 %v591, %v613
    %v641 = vmul.f32 %v595, %v613
    %v642 = vmul.f32 %v599, %v613
    %v643 = vmul.f32 %v603, %v613
    %v644 = vmul.f32 %v607, %v613
    %v645 = vmul.f32 %v611, %v613
    %v646 = vadd.f32 %v453, %v614
    %v647 = vadd.f32 %v454, %v615
    %v648 = vadd.f32 %v455, %v616
    %v649 = vadd.f32 %v456, %v617
    %v650 = vadd.f32 %v457, %v618
    %v651 = vadd.f32 %v458, %v619
    %v652 = vadd.f32 %v459, %v620
    %v653 = vadd.f32 %v460, %v621
    %v654 = vadd.f32 %v461, %v622
    %v655 = vadd.f32 %v462, %v623
    %v656 = vadd.f32 %v463, %v624
    %v657 = vadd.f32 %v464, %v625
    %v658 = vadd.f32 %v465, %v626
    %v659 = vadd.f32 %v466, %v627
    %v660 = vadd.f32 %v467, %v628
    %v661 = vadd.f32 %v468, %v629
    %v662 = vadd.f32 %v469, %v630
    %v663 = vadd.f32 %v470, %v631
    %v664 = vadd.f32 %v471, %v632
    %v665 = vadd.f32 %v472, %v633
    %v666 = vadd.f32 %v473, %v634
    %v667 = vadd.f32 %v474, %v635
    %v668 = vadd.f32 %v475, %v636
    %v669 = vadd.f32 %v476, %v637
    %v670 = vadd.f32 %v477, %v638
    %v671 = vadd.f32 %v478, %v639
    %v672 = vadd.f32 %v479, %v640
    %v673 = vadd.f32 %v480, %v641
    %v674 = vadd.f32 %v481, %v642
    %v675 = vadd.f32 %v482, %v643
    %v676 = vadd.f32 %v483, %v644
    %v677 = vadd.f32 %v484, %v645
    %678 = vset.pattern.permute.xlu0 2
    %679 = vperm.xlu0 %678, %v36
    %v680 = vpop.permute.xlu0 %679
    %682 = vset.pattern.permute.xlu0 2
    %683 = vperm.xlu0 %682, %v37
    %v684 = vpop.permute.xlu0 %683
    %686 = vset.pattern.permute.xlu0 2
    %687 = vperm.xlu0 %686, %v38
    %v688 = vpop.permute.xlu0 %687
    %690 = vset.pattern.permute.xlu0 2
    %691 = vperm.xlu0 %690, %v39
    %v692 = vpop.permute.xlu0 %691
    %694 = vset.pattern.permute.xlu0 2
    %695 = vperm.xlu0 %694, %v40
    %v696 = vpop.permute.xlu0 %695
    %698 = vset.pattern.permute.xlu0 2
    %699 = vperm.xlu0 %698, %v41
    %v700 = vpop.permute.xlu0 %699
    %702 = vset.pattern.permute.xlu0 2
    %703 = vperm.xlu0 %702, %v42
    %v704 = vpop.permute.xlu0 %703
    %706 = vset.pattern.permute.xlu0 2
    %707 = vperm.xlu0 %706, %v43
    %v708 = vpop.permute.xlu0 %707
    %710 = vset.pattern.permute.xlu0 2
    %711 = vperm.xlu0 %710, %v44
    %v712 = vpop.permute.xlu0 %711
    %714 = vset.pattern.permute.xlu0 2
    %715 = vperm.xlu0 %714, %v45
    %v716 = vpop.permute.xlu0 %715
    %718 = vset.pattern.permute.xlu0 2
    %719 = vperm.xlu0 %718, %v46
    %v720 = vpop.permute.xlu0 %719
    %722 = vset.pattern.permute.xlu0 2
    %723 = vperm.xlu0 %722, %v47
    %v724 = vpop.permute.xlu0 %723
    %726 = vset.pattern.permute.xlu0 2
    %727 = vperm.xlu0 %726, %v48
    %v728 = vpop.permute.xlu0 %727
    %730 = vset.pattern.permute.xlu0 2
    %731 = vperm.xlu0 %730, %v49
    %v732 = vpop.permute.xlu0 %731
    %734 = vset.pattern.permute.xlu0 2
    %735 = vperm.xlu0 %734, %v50
    %v736 = vpop.permute.xlu0 %735
    %738 = vset.pattern.permute.xlu0 2
    %739 = vperm.xlu0 %738, %v51
    %v740 = vpop.permute.xlu0 %739
    %742 = vset.pattern.permute.xlu0 2
    %743 = vperm.xlu0 %742, %v52
    %v744 = vpop.permute.xlu0 %743
    %746 = vset.pattern.permute.xlu0 2
    %747 = vperm.xlu0 %746, %v53
    %v748 = vpop.permute.xlu0 %747
    %750 = vset.pattern.permute.xlu0 2
    %751 = vperm.xlu0 %750, %v54
    %v752 = vpop.permute.xlu0 %751
    %754 = vset.pattern.permute.xlu0 2
    %755 = vperm.xlu0 %754, %v55
    %v756 = vpop.permute.xlu0 %755
    %758 = vset.pattern.permute.xlu0 2
    %759 = vperm.xlu0 %758, %v56
    %v760 = vpop.permute.xlu0 %759
    %762 = vset.pattern.permute.xlu0 2
    %763 = vperm.xlu0 %762, %v57
    %v764 = vpop.permute.xlu0 %763
    %766 = vset.pattern.permute.xlu0 2
    %767 = vperm.xlu0 %766, %v58
    %v768 = vpop.permute.xlu0 %767
    %770 = vset.pattern.permute.xlu0 2
    %771 = vperm.xlu0 %770, %v59
    %v772 = vpop.permute.xlu0 %771
    %774 = vset.pattern.permute.xlu0 2
    %775 = vperm.xlu0 %774, %v60
    %v776 = vpop.permute.xlu0 %775
    %778 = vset.pattern.permute.xlu0 2
    %779 = vperm.xlu0 %778, %v61
    %v780 = vpop.permute.xlu0 %779
    %782 = vset.pattern.permute.xlu0 2
    %783 = vperm.xlu0 %782, %v62
    %v784 = vpop.permute.xlu0 %783
    %786 = vset.pattern.permute.xlu0 2
    %787 = vperm.xlu0 %786, %v63
    %v788 = vpop.permute.xlu0 %787
    %790 = vset.pattern.permute.xlu0 2
    %791 = vperm.xlu0 %790, %v64
    %v792 = vpop.permute.xlu0 %791
    %794 = vset.pattern.permute.xlu0 2
    %795 = vperm.xlu0 %794, %v65
    %v796 = vpop.permute.xlu0 %795
    %798 = vset.pattern.permute.xlu0 2
    %799 = vperm.xlu0 %798, %v66
    %v800 = vpop.permute.xlu0 %799
    %802 = vset.pattern.permute.xlu0 2
    %803 = vperm.xlu0 %802, %v67
    %v804 = vpop.permute.xlu0 %803
    %v806 = vperm.slane %v35, 2
    %v807 = vmul.f32 %v680, %v806
    %v808 = vmul.f32 %v684, %v806
    %v809 = vmul.f32 %v688, %v806
    %v810 = vmul.f32 %v692, %v806
    %v811 = vmul.f32 %v696, %v806
    %v812 = vmul.f32 %v700, %v806
    %v813 = vmul.f32 %v704, %v806
    %v814 = vmul.f32 %v708, %v806
    %v815 = vmul.f32 %v712, %v806
    %v816 = vmul.f32 %v716, %v806
    %v817 = vmul.f32 %v720, %v806
    %v818 = vmul.f32 %v724, %v806
    %v819 = vmul.f32 %v728, %v806
    %v820 = vmul.f32 %v732, %v806
    %v821 = vmul.f32 %v736, %v806
    %v822 = vmul.f32 %v740, %v806
    %v823 = vmul.f32 %v744, %v806
    %v824 = vmul.f32 %v748, %v806
    %v825 = vmul.f32 %v752, %v806
    %v826 = vmul.f32 %v756, %v806
    %v827 = vmul.f32 %v760, %v806
    %v828 = vmul.f32 %v764, %v806
    %v829 = vmul.f32 %v768, %v806
    %v830 = vmul.f32 %v772, %v806
    %v831 = vmul.f32 %v776, %v806
    %v832 = vmul.f32 %v780, %v806
    %v833 = vmul.f32 %v784, %v806
    %v834 = vmul.f32 %v788, %v806
    %v835 = vmul.f32 %v792, %v806
    %v836 = vmul.f32 %v796, %v806
    %v837 = vmul.f32 %v800, %v806
    %v838 = vmul.f32 %v804, %v806
    %v839 = vadd.f32 %v646, %v807
    %v840 = vadd.f32 %v647, %v808
    %v841 = vadd.f32 %v648, %v809
    %v842 = vadd.f32 %v649, %v810
    %v843 = vadd.f32 %v650, %v811
    %v844 = vadd.f32 %v651, %v812
    %v845 = vadd.f32 %v652, %v813
    %v846 = vadd.f32 %v653, %v814
    %v847 = vadd.f32 %v654, %v815
    %v848 = vadd.f32 %v655, %v816
    %v849 = vadd.f32 %v656, %v817
    %v850 = vadd.f32 %v657, %v818
    %v851 = vadd.f32 %v658, %v819
    %v852 = vadd.f32 %v659, %v820
    %v853 = vadd.f32 %v660, %v821
    %v854 = vadd.f32 %v661, %v822
    %v855 = vadd.f32 %v662, %v823
    %v856 = vadd.f32 %v663, %v824
    %v857 = vadd.f32 %v664, %v825
    %v858 = vadd.f32 %v665, %v826
    %v859 = vadd.f32 %v666, %v827
    %v860 = vadd.f32 %v667, %v828
    %v861 = vadd.f32 %v668, %v829
    %v862 = vadd.f32 %v669, %v830
    %v863 = vadd.f32 %v670, %v831
    %v864 = vadd.f32 %v671, %v832
    %v865 = vadd.f32 %v672, %v833
    %v866 = vadd.f32 %v673, %v834
    %v867 = vadd.f32 %v674, %v835
    %v868 = vadd.f32 %v675, %v836
    %v869 = vadd.f32 %v676, %v837
    %v870 = vadd.f32 %v677, %v838
    %871 = vset.pattern.permute.xlu0 3
    %872 = vperm.xlu0 %871, %v36
    %v873 = vpop.permute.xlu0 %872
    %875 = vset.pattern.permute.xlu0 3
    %876 = vperm.xlu0 %875, %v37
    %v877 = vpop.permute.xlu0 %876
    %879 = vset.pattern.permute.xlu0 3
    %880 = vperm.xlu0 %879, %v38
    %v881 = vpop.permute.xlu0 %880
    %883 = vset.pattern.permute.xlu0 3
    %884 = vperm.xlu0 %883, %v39
    %v885 = vpop.permute.xlu0 %884
    %887 = vset.pattern.permute.xlu0 3
    %888 = vperm.xlu0 %887, %v40
    %v889 = vpop.permute.xlu0 %888
    %891 = vset.pattern.permute.xlu0 3
    %892 = vperm.xlu0 %891, %v41
    %v893 = vpop.permute.xlu0 %892
    %895 = vset.pattern.permute.xlu0 3
    %896 = vperm.xlu0 %895, %v42
    %v897 = vpop.permute.xlu0 %896
    %899 = vset.pattern.permute.xlu0 3
    %900 = vperm.xlu0 %899, %v43
    %v901 = vpop.permute.xlu0 %900
    %903 = vset.pattern.permute.xlu0 3
    %904 = vperm.xlu0 %903, %v44
    %v905 = vpop.permute.xlu0 %904
    %907 = vset.pattern.permute.xlu0 3
    %908 = vperm.xlu0 %907, %v45
    %v909 = vpop.permute.xlu0 %908
    %911 = vset.pattern.permute.xlu0 3
    %912 = vperm.xlu0 %911, %v46
    %v913 = vpop.permute.xlu0 %912
    %915 = vset.pattern.permute.xlu0 3
    %916 = vperm.xlu0 %915, %v47
    %v917 = vpop.permute.xlu0 %916
    %919 = vset.pattern.permute.xlu0 3
    %920 = vperm.xlu0 %919, %v48
    %v921 = vpop.permute.xlu0 %920
    %923 = vset.pattern.permute.xlu0 3
    %924 = vperm.xlu0 %923, %v49
    %v925 = vpop.permute.xlu0 %924
    %927 = vset.pattern.permute.xlu0 3
    %928 = vperm.xlu0 %927, %v50
    %v929 = vpop.permute.xlu0 %928
    %931 = vset.pattern.permute.xlu0 3
    %932 = vperm.xlu0 %931, %v51
    %v933 = vpop.permute.xlu0 %932
    %935 = vset.pattern.permute.xlu0 3
    %936 = vperm.xlu0 %935, %v52
    %v937 = vpop.permute.xlu0 %936
    %939 = vset.pattern.permute.xlu0 3
    %940 = vperm.xlu0 %939, %v53
    %v941 = vpop.permute.xlu0 %940
    %943 = vset.pattern.permute.xlu0 3
    %944 = vperm.xlu0 %943, %v54
    %v945 = vpop.permute.xlu0 %944
    %947 = vset.pattern.permute.xlu0 3
    %948 = vperm.xlu0 %947, %v55
    %v949 = vpop.permute.xlu0 %948
    %951 = vset.pattern.permute.xlu0 3
    %952 = vperm.xlu0 %951, %v56
    %v953 = vpop.permute.xlu0 %952
    %955 = vset.pattern.permute.xlu0 3
    %956 = vperm.xlu0 %955, %v57
    %v957 = vpop.permute.xlu0 %956
    %959 = vset.pattern.permute.xlu0 3
    %960 = vperm.xlu0 %959, %v58
    %v961 = vpop.permute.xlu0 %960
    %963 = vset.pattern.permute.xlu0 3
    %964 = vperm.xlu0 %963, %v59
    %v965 = vpop.permute.xlu0 %964
    %967 = vset.pattern.permute.xlu0 3
    %968 = vperm.xlu0 %967, %v60
    %v969 = vpop.permute.xlu0 %968
    %971 = vset.pattern.permute.xlu0 3
    %972 = vperm.xlu0 %971, %v61
    %v973 = vpop.permute.xlu0 %972
    %975 = vset.pattern.permute.xlu0 3
    %976 = vperm.xlu0 %975, %v62
    %v977 = vpop.permute.xlu0 %976
    %979 = vset.pattern.permute.xlu0 3
    %980 = vperm.xlu0 %979, %v63
    %v981 = vpop.permute.xlu0 %980
    %983 = vset.pattern.permute.xlu0 3
    %984 = vperm.xlu0 %983, %v64
    %v985 = vpop.permute.xlu0 %984
    %987 = vset.pattern.permute.xlu0 3
    %988 = vperm.xlu0 %987, %v65
    %v989 = vpop.permute.xlu0 %988
    %991 = vset.pattern.permute.xlu0 3
    %992 = vperm.xlu0 %991, %v66
    %v993 = vpop.permute.xlu0 %992
    %995 = vset.pattern.permute.xlu0 3
    %996 = vperm.xlu0 %995, %v67
    %v997 = vpop.permute.xlu0 %996
    %v999 = vperm.slane %v35, 3
    %v1000 = vmul.f32 %v873, %v999
    %v1001 = vmul.f32 %v877, %v999
    %v1002 = vmul.f32 %v881, %v999
    %v1003 = vmul.f32 %v885, %v999
    %v1004 = vmul.f32 %v889, %v999
    %v1005 = vmul.f32 %v893, %v999
    %v1006 = vmul.f32 %v897, %v999
    %v1007 = vmul.f32 %v901, %v999
    %v1008 = vmul.f32 %v905, %v999
    %v1009 = vmul.f32 %v909, %v999
    %v1010 = vmul.f32 %v913, %v999
    %v1011 = vmul.f32 %v917, %v999
    %v1012 = vmul.f32 %v921, %v999
    %v1013 = vmul.f32 %v925, %v999
    %v1014 = vmul.f32 %v929, %v999
    %v1015 = vmul.f32 %v933, %v999
    %v1016 = vmul.f32 %v937, %v999
    %v1017 = vmul.f32 %v941, %v999
    %v1018 = vmul.f32 %v945, %v999
    %v1019 = vmul.f32 %v949, %v999
    %v1020 = vmul.f32 %v953, %v999
    %v1021 = vmul.f32 %v957, %v999
    %v1022 = vmul.f32 %v961, %v999
    %v1023 = vmul.f32 %v965, %v999
    %v1024 = vmul.f32 %v969, %v999
    %v1025 = vmul.f32 %v973, %v999
    %v1026 = vmul.f32 %v977, %v999
    %v1027 = vmul.f32 %v981, %v999
    %v1028 = vmul.f32 %v985, %v999
    %v1029 = vmul.f32 %v989, %v999
    %v1030 = vmul.f32 %v993, %v999
    %v1031 = vmul.f32 %v997, %v999
    %v1032 = vadd.f32 %v839, %v1000
    %v1033 = vadd.f32 %v840, %v1001
    %v1034 = vadd.f32 %v841, %v1002
    %v1035 = vadd.f32 %v842, %v1003
    %v1036 = vadd.f32 %v843, %v1004
    %v1037 = vadd.f32 %v844, %v1005
    %v1038 = vadd.f32 %v845, %v1006
    %v1039 = vadd.f32 %v846, %v1007
    %v1040 = vadd.f32 %v847, %v1008
    %v1041 = vadd.f32 %v848, %v1009
    %v1042 = vadd.f32 %v849, %v1010
    %v1043 = vadd.f32 %v850, %v1011
    %v1044 = vadd.f32 %v851, %v1012
    %v1045 = vadd.f32 %v852, %v1013
    %v1046 = vadd.f32 %v853, %v1014
    %v1047 = vadd.f32 %v854, %v1015
    %v1048 = vadd.f32 %v855, %v1016
    %v1049 = vadd.f32 %v856, %v1017
    %v1050 = vadd.f32 %v857, %v1018
    %v1051 = vadd.f32 %v858, %v1019
    %v1052 = vadd.f32 %v859, %v1020
    %v1053 = vadd.f32 %v860, %v1021
    %v1054 = vadd.f32 %v861, %v1022
    %v1055 = vadd.f32 %v862, %v1023
    %v1056 = vadd.f32 %v863, %v1024
    %v1057 = vadd.f32 %v864, %v1025
    %v1058 = vadd.f32 %v865, %v1026
    %v1059 = vadd.f32 %v866, %v1027
    %v1060 = vadd.f32 %v867, %v1028
    %v1061 = vadd.f32 %v868, %v1029
    %v1062 = vadd.f32 %v869, %v1030
    %v1063 = vadd.f32 %v870, %v1031
    %vm1064 = vcmp.gt.f32.partialorder %v1032, 0.0
    %vm1065 = vcmp.gt.f32.partialorder %v1033, 0.0
    %vm1066 = vcmp.gt.f32.partialorder %v1034, 0.0
    %vm1067 = vcmp.gt.f32.partialorder %v1035, 0.0
    %vm1068 = vcmp.gt.f32.partialorder %v1036, 0.0
    %vm1069 = vcmp.gt.f32.partialorder %v1037, 0.0
    %vm1070 = vcmp.gt.f32.partialorder %v1038, 0.0
    %vm1071 = vcmp.gt.f32.partialorder %v1039, 0.0
    %vm1072 = vcmp.gt.f32.partialorder %v1040, 0.0
    %vm1073 = vcmp.gt.f32.partialorder %v1041, 0.0
    %vm1074 = vcmp.gt.f32.partialorder %v1042, 0.0
    %vm1075 = vcmp.gt.f32.partialorder %v1043, 0.0
    %vm1076 = vcmp.gt.f32.partialorder %v1044, 0.0
    %vm1077 = vcmp.gt.f32.partialorder %v1045, 0.0
    %vm1078 = vcmp.gt.f32.partialorder %v1046, 0.0
    %vm1079 = vcmp.gt.f32.partialorder %v1047, 0.0
    %vm1080 = vcmp.gt.f32.partialorder %v1048, 0.0
    %vm1081 = vcmp.gt.f32.partialorder %v1049, 0.0
    %vm1082 = vcmp.gt.f32.partialorder %v1050, 0.0
    %vm1083 = vcmp.gt.f32.partialorder %v1051, 0.0
    %vm1084 = vcmp.gt.f32.partialorder %v1052, 0.0
    %vm1085 = vcmp.gt.f32.partialorder %v1053, 0.0
    %vm1086 = vcmp.gt.f32.partialorder %v1054, 0.0
    %vm1087 = vcmp.gt.f32.partialorder %v1055, 0.0
    %vm1088 = vcmp.gt.f32.partialorder %v1056, 0.0
    %vm1089 = vcmp.gt.f32.partialorder %v1057, 0.0
    %vm1090 = vcmp.gt.f32.partialorder %v1058, 0.0
    %vm1091 = vcmp.gt.f32.partialorder %v1059, 0.0
    %vm1092 = vcmp.gt.f32.partialorder %v1060, 0.0
    %vm1093 = vcmp.gt.f32.partialorder %v1061, 0.0
    %vm1094 = vcmp.gt.f32.partialorder %v1062, 0.0
    %vm1095 = vcmp.gt.f32.partialorder %v1063, 0.0
    %v1096 = vmin.f32 %v1032, 0.0
    %v1097 = vmin.f32 %v1033, 0.0
    %v1098 = vmin.f32 %v1034, 0.0
    %v1099 = vmin.f32 %v1035, 0.0
    %v1100 = vmin.f32 %v1036, 0.0
    %v1101 = vmin.f32 %v1037, 0.0
    %v1102 = vmin.f32 %v1038, 0.0
    %v1103 = vmin.f32 %v1039, 0.0
    %v1104 = vmin.f32 %v1040, 0.0
    %v1105 = vmin.f32 %v1041, 0.0
    %v1106 = vmin.f32 %v1042, 0.0
    %v1107 = vmin.f32 %v1043, 0.0
    %v1108 = vmin.f32 %v1044, 0.0
    %v1109 = vmin.f32 %v1045, 0.0
    %v1110 = vmin.f32 %v1046, 0.0
    %v1111 = vmin.f32 %v1047, 0.0
    %v1112 = vmin.f32 %v1048, 0.0
    %v1113 = vmin.f32 %v1049, 0.0
    %v1114 = vmin.f32 %v1050, 0.0
    %v1115 = vmin.f32 %v1051, 0.0
    %v1116 = vmin.f32 %v1052, 0.0
    %v1117 = vmin.f32 %v1053, 0.0
    %v1118 = vmin.f32 %v1054, 0.0
    %v1119 = vmin.f32 %v1055, 0.0
    %v1120 = vmin.f32 %v1056, 0.0
    %v1121 = vmin.f32 %v1057, 0.0
    %v1122 = vmin.f32 %v1058, 0.0
    %v1123 = vmin.f32 %v1059, 0.0
    %v1124 = vmin.f32 %v1060, 0.0
    %v1125 = vmin.f32 %v1061, 0.0
    %v1126 = vmin.f32 %v1062, 0.0
    %v1127 = vmin.f32 %v1063, 0.0
    %v1128 = vmul.f32 %v1096, 1.442695
    %v1129 = vpow.pop %v1128
    %v1130 = vmul.f32 %v1097, 1.442695
    %v1131 = vpow.pop %v1130
    %v1132 = vmul.f32 %v1098, 1.442695
    %v1133 = vpow.pop %v1132
    %v1134 = vmul.f32 %v1099, 1.442695
    %v1135 = vpow.pop %v1134
    %v1136 = vmul.f32 %v1100, 1.442695
    %v1137 = vpow.pop %v1136
    %v1138 = vmul.f32 %v1101, 1.442695
    %v1139 = vpow.pop %v1138
    %v1140 = vmul.f32 %v1102, 1.442695
    %v1141 = vpow.pop %v1140
    %v1142 = vmul.f32 %v1103, 1.442695
    %v1143 = vpow.pop %v1142
    %v1144 = vmul.f32 %v1104, 1.442695
    %v1145 = vpow.pop %v1144
    %v1146 = vmul.f32 %v1105, 1.442695
    %v1147 = vpow.pop %v1146
    %v1148 = vmul.f32 %v1106, 1.442695
    %v1149 = vpow.pop %v1148
    %v1150 = vmul.f32 %v1107, 1.442695
    %v1151 = vpow.pop %v1150
    %v1152 = vmul.f32 %v1108, 1.442695
    %v1153 = vpow.pop %v1152
    %v1154 = vmul.f32 %v1109, 1.442695
    %v1155 = vpow.pop %v1154
    %v1156 = vmul.f32 %v1110, 1.442695
    %v1157 = vpow.pop %v1156
    %v1158 = vmul.f32 %v1111, 1.442695
    %v1159 = vpow.pop %v1158
    %v1160 = vmul.f32 %v1112, 1.442695
    %v1161 = vpow.pop %v1160
    %v1162 = vmul.f32 %v1113, 1.442695
    %v1163 = vpow.pop %v1162
    %v1164 = vmul.f32 %v1114, 1.442695
    %v1165 = vpow.pop %v1164
    %v1166 = vmul.f32 %v1115, 1.442695
    %v1167 = vpow.pop %v1166
    %v1168 = vmul.f32 %v1116, 1.442695
    %v1169 = vpow.pop %v1168
    %v1170 = vmul.f32 %v1117, 1.442695
    %v1171 = vpow.pop %v1170
    %v1172 = vmul.f32 %v1118, 1.442695
    %v1173 = vpow.pop %v1172
    %v1174 = vmul.f32 %v1119, 1.442695
    %v1175 = vpow.pop %v1174
    %v1176 = vmul.f32 %v1120, 1.442695
    %v1177 = vpow.pop %v1176
    %v1178 = vmul.f32 %v1121, 1.442695
    %v1179 = vpow.pop %v1178
    %v1180 = vmul.f32 %v1122, 1.442695
    %v1181 = vpow.pop %v1180
    %v1182 = vmul.f32 %v1123, 1.442695
    %v1183 = vpow.pop %v1182
    %v1184 = vmul.f32 %v1124, 1.442695
    %v1185 = vpow.pop %v1184
    %v1186 = vmul.f32 %v1125, 1.442695
    %v1187 = vpow.pop %v1186
    %v1188 = vmul.f32 %v1126, 1.442695
    %v1189 = vpow.pop %v1188
    %v1190 = vmul.f32 %v1127, 1.442695
    %v1191 = vpow.pop %v1190
    %v1192 = vsub.f32 %v1129, 1.0
    %v1193 = vsub.f32 %v1131, 1.0
    %v1194 = vsub.f32 %v1133, 1.0
    %v1195 = vsub.f32 %v1135, 1.0
    %v1196 = vsub.f32 %v1137, 1.0
    %v1197 = vsub.f32 %v1139, 1.0
    %v1198 = vsub.f32 %v1141, 1.0
    %v1199 = vsub.f32 %v1143, 1.0
    %v1200 = vsub.f32 %v1145, 1.0
    %v1201 = vsub.f32 %v1147, 1.0
    %v1202 = vsub.f32 %v1149, 1.0
    %v1203 = vsub.f32 %v1151, 1.0
    %v1204 = vsub.f32 %v1153, 1.0
    %v1205 = vsub.f32 %v1155, 1.0
    %v1206 = vsub.f32 %v1157, 1.0
    %v1207 = vsub.f32 %v1159, 1.0
    %v1208 = vsub.f32 %v1161, 1.0
    %v1209 = vsub.f32 %v1163, 1.0
    %v1210 = vsub.f32 %v1165, 1.0
    %v1211 = vsub.f32 %v1167, 1.0
    %v1212 = vsub.f32 %v1169, 1.0
    %v1213 = vsub.f32 %v1171, 1.0
    %v1214 = vsub.f32 %v1173, 1.0
    %v1215 = vsub.f32 %v1175, 1.0
    %v1216 = vsub.f32 %v1177, 1.0
    %v1217 = vsub.f32 %v1179, 1.0
    %v1218 = vsub.f32 %v1181, 1.0
    %v1219 = vsub.f32 %v1183, 1.0
    %v1220 = vsub.f32 %v1185, 1.0
    %v1221 = vsub.f32 %v1187, 1.0
    %v1222 = vsub.f32 %v1189, 1.0
    %v1223 = vsub.f32 %v1191, 1.0
    %v1224 = vsel %vm1064, %v1032, %v1192
    %v1225 = vsel %vm1065, %v1033, %v1193
    %v1226 = vsel %vm1066, %v1034, %v1194
    %v1227 = vsel %vm1067, %v1035, %v1195
    %v1228 = vsel %vm1068, %v1036, %v1196
    %v1229 = vsel %vm1069, %v1037, %v1197
    %v1230 = vsel %vm1070, %v1038, %v1198
    %v1231 = vsel %vm1071, %v1039, %v1199
    %v1232 = vsel %vm1072, %v1040, %v1200
    %v1233 = vsel %vm1073, %v1041, %v1201
    %v1234 = vsel %vm1074, %v1042, %v1202
    %v1235 = vsel %vm1075, %v1043, %v1203
    %v1236 = vsel %vm1076, %v1044, %v1204
    %v1237 = vsel %vm1077, %v1045, %v1205
    %v1238 = vsel %vm1078, %v1046, %v1206
    %v1239 = vsel %vm1079, %v1047, %v1207
    %v1240 = vsel %vm1080, %v1048, %v1208
    %v1241 = vsel %vm1081, %v1049, %v1209
    %v1242 = vsel %vm1082, %v1050, %v1210
    %v1243 = vsel %vm1083, %v1051, %v1211
    %v1244 = vsel %vm1084, %v1052, %v1212
    %v1245 = vsel %vm1085, %v1053, %v1213
    %v1246 = vsel %vm1086, %v1054, %v1214
    %v1247 = vsel %vm1087, %v1055, %v1215
    %v1248 = vsel %vm1088, %v1056, %v1216
    %v1249 = vsel %vm1089, %v1057, %v1217
    %v1250 = vsel %vm1090, %v1058, %v1218
    %v1251 = vsel %vm1091, %v1059, %v1219
    %v1252 = vsel %vm1092, %v1060, %v1220
    %v1253 = vsel %vm1093, %v1061, %v1221
    %v1254 = vsel %vm1094, %v1062, %v1222
    %v1255 = vsel %vm1095, %v1063, %v1223
    %v1256 = vld [vmem:[%s3] sm:$0xff]
    %v1257 = vld [vmem:[%s3 + $0x8] sm:$0xff]
    %v1258 = vld [vmem:[%s3 + $0x10] sm:$0xff]
    %v1259 = vld [vmem:[%s3 + $0x18] sm:$0xff]
    %v1260 = vld [vmem:[%s3 + $0x20] sm:$0xff]
    %v1261 = vld [vmem:[%s3 + $0x28] sm:$0xff]
    %v1262 = vld [vmem:[%s3 + $0x30] sm:$0xff]
    %v1263 = vld [vmem:[%s3 + $0x38] sm:$0xff]
    %v1264 = vld [vmem:[%s3 + $0x40] sm:$0xff]
    %v1265 = vld [vmem:[%s3 + $0x48] sm:$0xff]
    %v1266 = vld [vmem:[%s3 + $0x50] sm:$0xff]
    %v1267 = vld [vmem:[%s3 + $0x58] sm:$0xff]
    %v1268 = vld [vmem:[%s3 + $0x60] sm:$0xff]
    %v1269 = vld [vmem:[%s3 + $0x68] sm:$0xff]
    %v1270 = vld [vmem:[%s3 + $0x70] sm:$0xff]
    %v1271 = vld [vmem:[%s3 + $0x78] sm:$0xff]
    %v1272 = vld [vmem:[%s3 + $0x80] sm:$0xff]
    %v1273 = vld [vmem:[%s3 + $0x88] sm:$0xff]
    %v1274 = vld [vmem:[%s3 + $0x90] sm:$0xff]
    %v1275 = vld [vmem:[%s3 + $0x98] sm:$0xff]
    %v1276 = vld [vmem:[%s3 + $0xa0] sm:$0xff]
    %v1277 = vld [vmem:[%s3 + $0xa8] sm:$0xff]
    %v1278 = vld [vmem:[%s3 + $0xb0] sm:$0xff]
    %v1279 = vld [vmem:[%s3 + $0xb8] sm:$0xff]
    %v1280 = vld [vmem:[%s3 + $0xc0] sm:$0xff]
    %v1281 = vld [vmem:[%s3 + $0xc8] sm:$0xff]
    %v1282 = vld [vmem:[%s3 + $0xd0] sm:$0xff]
    %v1283 = vld [vmem:[%s3 + $0xd8] sm:$0xff]
    %v1284 = vld [vmem:[%s3 + $0xe0] sm:$0xff]
    %v1285 = vld [vmem:[%s3 + $0xe8] sm:$0xff]
    %v1286 = vld [vmem:[%s3 + $0xf0] sm:$0xff]
    %v1287 = vld [vmem:[%s3 + $0xf8] sm:$0xff]
    %v1288 = vpack.c.bf16 %v1225, %v1224
    %v1289 = vpack.c.bf16 %v1227, %v1226
    %v1290 = vpack.c.bf16 %v1229, %v1228
    %v1291 = vpack.c.bf16 %v1231, %v1230
    %v1292 = vpack.c.bf16 %v1233, %v1232
    %v1293 = vpack.c.bf16 %v1235, %v1234
    %v1294 = vpack.c.bf16 %v1237, %v1236
    %v1295 = vpack.c.bf16 %v1239, %v1238
    %v1296 = vpack.c.bf16 %v1241, %v1240
    %v1297 = vpack.c.bf16 %v1243, %v1242
    %v1298 = vpack.c.bf16 %v1245, %v1244
    %v1299 = vpack.c.bf16 %v1247, %v1246
    %v1300 = vpack.c.bf16 %v1249, %v1248
    %v1301 = vpack.c.bf16 %v1251, %v1250
    %v1302 = vpack.c.bf16 %v1253, %v1252
    %v1303 = vpack.c.bf16 %v1255, %v1254
    %v1304 = vld [vmem:[%s4] sm:$0xff]
    %v1305 = vld [vmem:[%s4 + $0x8] sm:$0xff]
    %v1306 = vld [vmem:[%s4 + $0x10] sm:$0xff]
    %v1307 = vld [vmem:[%s4 + $0x18] sm:$0xff]
    %v1308 = vld [vmem:[%s4 + $0x20] sm:$0xff]
    %v1309 = vld [vmem:[%s4 + $0x28] sm:$0xff]
    %v1310 = vld [vmem:[%s4 + $0x30] sm:$0xff]
    %v1311 = vld [vmem:[%s4 + $0x38] sm:$0xff]
    %v1312 = vld [vmem:[%s4 + $0x40] sm:$0xff]
    %v1313 = vld [vmem:[%s4 + $0x48] sm:$0xff]
    %v1314 = vld [vmem:[%s4 + $0x50] sm:$0xff]
    %v1315 = vld [vmem:[%s4 + $0x58] sm:$0xff]
    %v1316 = vld [vmem:[%s4 + $0x60] sm:$0xff]
    %v1317 = vld [vmem:[%s4 + $0x68] sm:$0xff]
    %v1318 = vld [vmem:[%s4 + $0x70] sm:$0xff]
    %v1319 = vld [vmem:[%s4 + $0x78] sm:$0xff]
    %v1320 = vld [vmem:[%s4 + $0x80] sm:$0xff]
    %v1321 = vld [vmem:[%s4 + $0x88] sm:$0xff]
    %v1322 = vld [vmem:[%s4 + $0x90] sm:$0xff]
    %v1323 = vld [vmem:[%s4 + $0x98] sm:$0xff]
    %v1324 = vld [vmem:[%s4 + $0xa0] sm:$0xff]
    %v1325 = vld [vmem:[%s4 + $0xa8] sm:$0xff]
    %v1326 = vld [vmem:[%s4 + $0xb0] sm:$0xff]
    %v1327 = vld [vmem:[%s4 + $0xb8] sm:$0xff]
    %v1328 = vld [vmem:[%s4 + $0xc0] sm:$0xff]
    %v1329 = vld [vmem:[%s4 + $0xc8] sm:$0xff]
    %v1330 = vld [vmem:[%s4 + $0xd0] sm:$0xff]
    %v1331 = vld [vmem:[%s4 + $0xd8] sm:$0xff]
    %v1332 = vld [vmem:[%s4 + $0xe0] sm:$0xff]
    %v1333 = vld [vmem:[%s4 + $0xe8] sm:$0xff]
    %v1334 = vld [vmem:[%s4 + $0xf0] sm:$0xff]
    %v1335 = vld [vmem:[%s4 + $0xf8] sm:$0xff]
    %1337 = vset.pattern.permute.xlu0 0
    %1338 = vperm.xlu0 %1337, %v1304
    %v1339 = vpop.permute.xlu0 %1338
    %1342 = vset.pattern.permute.xlu0 0
    %1343 = vperm.xlu0 %1342, %v1305
    %v1344 = vpop.permute.xlu0 %1343
    %1347 = vset.pattern.permute.xlu0 0
    %1348 = vperm.xlu0 %1347, %v1306
    %v1349 = vpop.permute.xlu0 %1348
    %1352 = vset.pattern.permute.xlu0 0
    %1353 = vperm.xlu0 %1352, %v1307
    %v1354 = vpop.permute.xlu0 %1353
    %1357 = vset.pattern.permute.xlu0 0
    %1358 = vperm.xlu0 %1357, %v1308
    %v1359 = vpop.permute.xlu0 %1358
    %1362 = vset.pattern.permute.xlu0 0
    %1363 = vperm.xlu0 %1362, %v1309
    %v1364 = vpop.permute.xlu0 %1363
    %1367 = vset.pattern.permute.xlu0 0
    %1368 = vperm.xlu0 %1367, %v1310
    %v1369 = vpop.permute.xlu0 %1368
    %1372 = vset.pattern.permute.xlu0 0
    %1373 = vperm.xlu0 %1372, %v1311
    %v1374 = vpop.permute.xlu0 %1373
    %1377 = vset.pattern.permute.xlu0 0
    %1378 = vperm.xlu0 %1377, %v1312
    %v1379 = vpop.permute.xlu0 %1378
    %1382 = vset.pattern.permute.xlu0 0
    %1383 = vperm.xlu0 %1382, %v1313
    %v1384 = vpop.permute.xlu0 %1383
    %1387 = vset.pattern.permute.xlu0 0
    %1388 = vperm.xlu0 %1387, %v1314
    %v1389 = vpop.permute.xlu0 %1388
    %1392 = vset.pattern.permute.xlu0 0
    %1393 = vperm.xlu0 %1392, %v1315
    %v1394 = vpop.permute.xlu0 %1393
    %1397 = vset.pattern.permute.xlu0 0
    %1398 = vperm.xlu0 %1397, %v1316
    %v1399 = vpop.permute.xlu0 %1398
    %1402 = vset.pattern.permute.xlu0 0
    %1403 = vperm.xlu0 %1402, %v1317
    %v1404 = vpop.permute.xlu0 %1403
    %1407 = vset.pattern.permute.xlu0 0
    %1408 = vperm.xlu0 %1407, %v1318
    %v1409 = vpop.permute.xlu0 %1408
    %1412 = vset.pattern.permute.xlu0 0
    %1413 = vperm.xlu0 %1412, %v1319
    %v1414 = vpop.permute.xlu0 %1413
    %1417 = vset.pattern.permute.xlu0 0
    %1418 = vperm.xlu0 %1417, %v1320
    %v1419 = vpop.permute.xlu0 %1418
    %1422 = vset.pattern.permute.xlu0 0
    %1423 = vperm.xlu0 %1422, %v1321
    %v1424 = vpop.permute.xlu0 %1423
    %1427 = vset.pattern.permute.xlu0 0
    %1428 = vperm.xlu0 %1427, %v1322
    %v1429 = vpop.permute.xlu0 %1428
    %1432 = vset.pattern.permute.xlu0 0
    %1433 = vperm.xlu0 %1432, %v1323
    %v1434 = vpop.permute.xlu0 %1433
    %1437 = vset.pattern.permute.xlu0 0
    %1438 = vperm.xlu0 %1437, %v1324
    %v1439 = vpop.permute.xlu0 %1438
    %1442 = vset.pattern.permute.xlu0 0
    %1443 = vperm.xlu0 %1442, %v1325
    %v1444 = vpop.permute.xlu0 %1443
    %1447 = vset.pattern.permute.xlu0 0
    %1448 = vperm.xlu0 %1447, %v1326
    %v1449 = vpop.permute.xlu0 %1448
    %1452 = vset.pattern.permute.xlu0 0
    %1453 = vperm.xlu0 %1452, %v1327
    %v1454 = vpop.permute.xlu0 %1453
    %1457 = vset.pattern.permute.xlu0 0
    %1458 = vperm.xlu0 %1457, %v1328
    %v1459 = vpop.permute.xlu0 %1458
    %1462 = vset.pattern.permute.xlu0 0
    %1463 = vperm.xlu0 %1462, %v1329
    %v1464 = vpop.permute.xlu0 %1463
    %1467 = vset.pattern.permute.xlu0 0
    %1468 = vperm.xlu0 %1467, %v1330
    %v1469 = vpop.permute.xlu0 %1468
    %1472 = vset.pattern.permute.xlu0 0
    %1473 = vperm.xlu0 %1472, %v1331
    %v1474 = vpop.permute.xlu0 %1473
    %1477 = vset.pattern.permute.xlu0 0
    %1478 = vperm.xlu0 %1477, %v1332
    %v1479 = vpop.permute.xlu0 %1478
    %1482 = vset.pattern.permute.xlu0 0
    %1483 = vperm.xlu0 %1482, %v1333
    %v1484 = vpop.permute.xlu0 %1483
    %1487 = vset.pattern.permute.xlu0 0
    %1488 = vperm.xlu0 %1487, %v1334
    %v1489 = vpop.permute.xlu0 %1488
    %1492 = vset.pattern.permute.xlu0 0
    %1493 = vperm.xlu0 %1492, %v1335
    %v1494 = vpop.permute.xlu0 %1493
    %v1528 = vunpack.c.l.b16 %v1256
    %v1529 = vunpack.c.h.b16 %v1256
    %v1530 = vunpack.c.l.b16 %v1257
    %v1531 = vunpack.c.h.b16 %v1257
    %v1532 = vunpack.c.l.b16 %v1258
    %v1533 = vunpack.c.h.b16 %v1258
    %v1534 = vunpack.c.l.b16 %v1259
    %v1535 = vunpack.c.h.b16 %v1259
    %v1536 = vunpack.c.l.b16 %v1260
    %v1537 = vunpack.c.h.b16 %v1260
    %v1538 = vunpack.c.l.b16 %v1261
    %v1539 = vunpack.c.h.b16 %v1261
    %v1540 = vunpack.c.l.b16 %v1262
    %v1541 = vunpack.c.h.b16 %v1262
    %v1542 = vunpack.c.l.b16 %v1263
    %v1543 = vunpack.c.h.b16 %v1263
    %v1544 = vunpack.c.l.b16 %v1264
    %v1545 = vunpack.c.h.b16 %v1264
    %v1546 = vunpack.c.l.b16 %v1265
    %v1547 = vunpack.c.h.b16 %v1265
    %v1548 = vunpack.c.l.b16 %v1266
    %v1549 = vunpack.c.h.b16 %v1266
    %v1550 = vunpack.c.l.b16 %v1267
    %v1551 = vunpack.c.h.b16 %v1267
    %v1552 = vunpack.c.l.b16 %v1268
    %v1553 = vunpack.c.h.b16 %v1268
    %v1554 = vunpack.c.l.b16 %v1269
    %v1555 = vunpack.c.h.b16 %v1269
    %v1556 = vunpack.c.l.b16 %v1270
    %v1557 = vunpack.c.h.b16 %v1270
    %v1558 = vunpack.c.l.b16 %v1271
    %v1559 = vunpack.c.h.b16 %v1271
    %v1560 = vunpack.c.l.b16 %v1272
    %v1561 = vunpack.c.h.b16 %v1272
    %v1562 = vunpack.c.l.b16 %v1273
    %v1563 = vunpack.c.h.b16 %v1273
    %v1564 = vunpack.c.l.b16 %v1274
    %v1565 = vunpack.c.h.b16 %v1274
    %v1566 = vunpack.c.l.b16 %v1275
    %v1567 = vunpack.c.h.b16 %v1275
    %v1568 = vunpack.c.l.b16 %v1276
    %v1569 = vunpack.c.h.b16 %v1276
    %v1570 = vunpack.c.l.b16 %v1277
    %v1571 = vunpack.c.h.b16 %v1277
    %v1572 = vunpack.c.l.b16 %v1278
    %v1573 = vunpack.c.h.b16 %v1278
    %v1574 = vunpack.c.l.b16 %v1279
    %v1575 = vunpack.c.h.b16 %v1279
    %v1576 = vunpack.c.l.b16 %v1280
    %v1577 = vunpack.c.h.b16 %v1280
    %v1578 = vunpack.c.l.b16 %v1281
    %v1579 = vunpack.c.h.b16 %v1281
    %v1580 = vunpack.c.l.b16 %v1282
    %v1581 = vunpack.c.h.b16 %v1282
    %v1582 = vunpack.c.l.b16 %v1283
    %v1583 = vunpack.c.h.b16 %v1283
    %v1584 = vunpack.c.l.b16 %v1284
    %v1585 = vunpack.c.h.b16 %v1284
    %v1586 = vunpack.c.l.b16 %v1285
    %v1587 = vunpack.c.h.b16 %v1285
    %v1588 = vunpack.c.l.b16 %v1286
    %v1589 = vunpack.c.h.b16 %v1286
    %v1590 = vunpack.c.l.b16 %v1287
    %v1591 = vunpack.c.h.b16 %v1287
    %v1592 = vpack.c.b16 %v1530, %v1528
    %v1593 = vpack.c.b16 %v1531, %v1529
    %v1594 = vpack.c.b16 %v1534, %v1532
    %v1595 = vpack.c.b16 %v1535, %v1533
    %v1596 = vpack.c.b16 %v1538, %v1536
    %v1597 = vpack.c.b16 %v1539, %v1537
    %v1598 = vpack.c.b16 %v1542, %v1540
    %v1599 = vpack.c.b16 %v1543, %v1541
    %v1600 = vpack.c.b16 %v1546, %v1544
    %v1601 = vpack.c.b16 %v1547, %v1545
    %v1602 = vpack.c.b16 %v1550, %v1548
    %v1603 = vpack.c.b16 %v1551, %v1549
    %v1604 = vpack.c.b16 %v1554, %v1552
    %v1605 = vpack.c.b16 %v1555, %v1553
    %v1606 = vpack.c.b16 %v1558, %v1556
    %v1607 = vpack.c.b16 %v1559, %v1557
    %v1608 = vpack.c.b16 %v1562, %v1560
    %v1609 = vpack.c.b16 %v1563, %v1561
    %v1610 = vpack.c.b16 %v1566, %v1564
    %v1611 = vpack.c.b16 %v1567, %v1565
    %v1612 = vpack.c.b16 %v1570, %v1568
    %v1613 = vpack.c.b16 %v1571, %v1569
    %v1614 = vpack.c.b16 %v1574, %v1572
    %v1615 = vpack.c.b16 %v1575, %v1573
    %v1616 = vpack.c.b16 %v1578, %v1576
    %v1617 = vpack.c.b16 %v1579, %v1577
    %v1618 = vpack.c.b16 %v1582, %v1580
    %v1619 = vpack.c.b16 %v1583, %v1581
    %v1620 = vpack.c.b16 %v1586, %v1584
    %v1621 = vpack.c.b16 %v1587, %v1585
    %v1622 = vpack.c.b16 %v1590, %v1588
    %v1623 = vpack.c.b16 %v1591, %v1589
    %1656 = vmatpush.bf16.msra.mxu0 %v1295
    %1657 = vmatpush.bf16.msra.mxu0 %v1294
    %1658 = vmatpush.bf16.msra.mxu0 %v1293
    %1659 = vmatpush.bf16.msra.mxu0 %v1292
    %1660 = vmatpush.bf16.msra.mxu0 %v1291
    %1661 = vmatpush.bf16.msra.mxu0 %v1290
    %1662 = vmatpush.bf16.msra.mxu0 %v1289
    %1663 = vmatpush.bf16.msra.mxu0 %v1288
    %1664 = vmatmul.bf16.gmra.mxu0 %v1592
    %v1665 = vpop.f32.mrf.mxu0
    %v1666 = vadd.f32 %v1339, %v1665
    %v1667 = vpop.f32.mrf.mxu0
    %v1668 = vadd.f32 %v1344, %v1667
    %1669 = vmatmul.bf16.gmra.mxu0 %v1594
    %v1670 = vpop.f32.mrf.mxu0
    %v1671 = vadd.f32 %v1349, %v1670
    %v1672 = vpop.f32.mrf.mxu0
    %v1673 = vadd.f32 %v1354, %v1672
    %1674 = vmatmul.bf16.gmra.mxu0 %v1596
    %v1675 = vpop.f32.mrf.mxu0
    %v1676 = vadd.f32 %v1359, %v1675
    %v1677 = vpop.f32.mrf.mxu0
    %v1678 = vadd.f32 %v1364, %v1677
    %1679 = vmatmul.bf16.gmra.mxu0 %v1598
    %v1680 = vpop.f32.mrf.mxu0
    %v1681 = vadd.f32 %v1369, %v1680
    %v1682 = vpop.f32.mrf.mxu0
    %v1683 = vadd.f32 %v1374, %v1682
    %1684 = vmatmul.bf16.gmra.mxu0 %v1600
    %v1685 = vpop.f32.mrf.mxu0
    %v1686 = vadd.f32 %v1379, %v1685
    %v1687 = vpop.f32.mrf.mxu0
    %v1688 = vadd.f32 %v1384, %v1687
    %1689 = vmatmul.bf16.gmra.mxu0 %v1602
    %v1690 = vpop.f32.mrf.mxu0
    %v1691 = vadd.f32 %v1389, %v1690
    %v1692 = vpop.f32.mrf.mxu0
    %v1693 = vadd.f32 %v1394, %v1692
    %1694 = vmatmul.bf16.gmra.mxu0 %v1604
    %v1695 = vpop.f32.mrf.mxu0
    %v1696 = vadd.f32 %v1399, %v1695
    %v1697 = vpop.f32.mrf.mxu0
    %v1698 = vadd.f32 %v1404, %v1697
    %1699 = vmatmul.bf16.gmra.mxu0 %v1606
    %v1700 = vpop.f32.mrf.mxu0
    %v1701 = vadd.f32 %v1409, %v1700
    %v1702 = vpop.f32.mrf.mxu0
    %v1703 = vadd.f32 %v1414, %v1702
    %1704 = vmatmul.bf16.gmra.mxu0 %v1608
    %v1705 = vpop.f32.mrf.mxu0
    %v1706 = vadd.f32 %v1419, %v1705
    %v1707 = vpop.f32.mrf.mxu0
    %v1708 = vadd.f32 %v1424, %v1707
    %1709 = vmatmul.bf16.gmra.mxu0 %v1610
    %v1710 = vpop.f32.mrf.mxu0
    %v1711 = vadd.f32 %v1429, %v1710
    %v1712 = vpop.f32.mrf.mxu0
    %v1713 = vadd.f32 %v1434, %v1712
    %1714 = vmatmul.bf16.gmra.mxu0 %v1612
    %v1715 = vpop.f32.mrf.mxu0
    %v1716 = vadd.f32 %v1439, %v1715
    %v1717 = vpop.f32.mrf.mxu0
    %v1718 = vadd.f32 %v1444, %v1717
    %1719 = vmatmul.bf16.gmra.mxu0 %v1614
    %v1720 = vpop.f32.mrf.mxu0
    %v1721 = vadd.f32 %v1449, %v1720
    %v1722 = vpop.f32.mrf.mxu0
    %v1723 = vadd.f32 %v1454, %v1722
    %1724 = vmatmul.bf16.gmra.mxu0 %v1616
    %v1725 = vpop.f32.mrf.mxu0
    %v1726 = vadd.f32 %v1459, %v1725
    %v1727 = vpop.f32.mrf.mxu0
    %v1728 = vadd.f32 %v1464, %v1727
    %1729 = vmatmul.bf16.gmra.mxu0 %v1618
    %v1730 = vpop.f32.mrf.mxu0
    %v1731 = vadd.f32 %v1469, %v1730
    %v1732 = vpop.f32.mrf.mxu0
    %v1733 = vadd.f32 %v1474, %v1732
    %1734 = vmatmul.bf16.gmra.mxu0 %v1620
    %v1735 = vpop.f32.mrf.mxu0
    %v1736 = vadd.f32 %v1479, %v1735
    %v1737 = vpop.f32.mrf.mxu0
    %v1738 = vadd.f32 %v1484, %v1737
    %1739 = vmatmul.bf16.gmra.mxu0 %v1622
    %v1740 = vpop.f32.mrf.mxu0
    %v1741 = vadd.f32 %v1489, %v1740
    %v1742 = vpop.f32.mrf.mxu0
    %v1743 = vadd.f32 %v1494, %v1742
    %1744 = vdwg.mxu0
    %1745 = vmatpush.bf16.msra.mxu0 %v1303
    %1746 = vmatpush.bf16.msra.mxu0 %v1302
    %1747 = vmatpush.bf16.msra.mxu0 %v1301
    %1748 = vmatpush.bf16.msra.mxu0 %v1300
    %1749 = vmatpush.bf16.msra.mxu0 %v1299
    %1750 = vmatpush.bf16.msra.mxu0 %v1298
    %1751 = vmatpush.bf16.msra.mxu0 %v1297
    %1752 = vmatpush.bf16.msra.mxu0 %v1296
    %1753 = vmatmul.bf16.gmra.mxu0 %v1593
    %v1754 = vpop.f32.mrf.mxu0
    %v1755 = vadd.f32 %v1666, %v1754
    %v1756 = vpop.f32.mrf.mxu0
    %v1757 = vadd.f32 %v1668, %v1756
    %1758 = vmatmul.bf16.gmra.mxu0 %v1595
    %v1759 = vpop.f32.mrf.mxu0
    %v1760 = vadd.f32 %v1671, %v1759
    %v1761 = vpop.f32.mrf.mxu0
    %v1762 = vadd.f32 %v1673, %v1761
    %1763 = vmatmul.bf16.gmra.mxu0 %v1597
    %v1764 = vpop.f32.mrf.mxu0
    %v1765 = vadd.f32 %v1676, %v1764
    %v1766 = vpop.f32.mrf.mxu0
    %v1767 = vadd.f32 %v1678, %v1766
    %1768 = vmatmul.bf16.gmra.mxu0 %v1599
    %v1769 = vpop.f32.mrf.mxu0
    %v1770 = vadd.f32 %v1681, %v1769
    %v1771 = vpop.f32.mrf.mxu0
    %v1772 = vadd.f32 %v1683, %v1771
    %1773 = vmatmul.bf16.gmra.mxu0 %v1601
    %v1774 = vpop.f32.mrf.mxu0
    %v1775 = vadd.f32 %v1686, %v1774
    %v1776 = vpop.f32.mrf.mxu0
    %v1777 = vadd.f32 %v1688, %v1776
    %1778 = vmatmul.bf16.gmra.mxu0 %v1603
    %v1779 = vpop.f32.mrf.mxu0
    %v1780 = vadd.f32 %v1691, %v1779
    %v1781 = vpop.f32.mrf.mxu0
    %v1782 = vadd.f32 %v1693, %v1781
    %1783 = vmatmul.bf16.gmra.mxu0 %v1605
    %v1784 = vpop.f32.mrf.mxu0
    %v1785 = vadd.f32 %v1696, %v1784
    %v1786 = vpop.f32.mrf.mxu0
    %v1787 = vadd.f32 %v1698, %v1786
    %1788 = vmatmul.bf16.gmra.mxu0 %v1607
    %v1789 = vpop.f32.mrf.mxu0
    %v1790 = vadd.f32 %v1701, %v1789
    %v1791 = vpop.f32.mrf.mxu0
    %v1792 = vadd.f32 %v1703, %v1791
    %1793 = vmatmul.bf16.gmra.mxu0 %v1609
    %v1794 = vpop.f32.mrf.mxu0
    %v1795 = vadd.f32 %v1706, %v1794
    %v1796 = vpop.f32.mrf.mxu0
    %v1797 = vadd.f32 %v1708, %v1796
    %1798 = vmatmul.bf16.gmra.mxu0 %v1611
    %v1799 = vpop.f32.mrf.mxu0
    %v1800 = vadd.f32 %v1711, %v1799
    %v1801 = vpop.f32.mrf.mxu0
    %v1802 = vadd.f32 %v1713, %v1801
    %1803 = vmatmul.bf16.gmra.mxu0 %v1613
    %v1804 = vpop.f32.mrf.mxu0
    %v1805 = vadd.f32 %v1716, %v1804
    %v1806 = vpop.f32.mrf.mxu0
    %v1807 = vadd.f32 %v1718, %v1806
    %1808 = vmatmul.bf16.gmra.mxu0 %v1615
    %v1809 = vpop.f32.mrf.mxu0
    %v1810 = vadd.f32 %v1721, %v1809
    %v1811 = vpop.f32.mrf.mxu0
    %v1812 = vadd.f32 %v1723, %v1811
    %1813 = vmatmul.bf16.gmra.mxu0 %v1617
    %v1814 = vpop.f32.mrf.mxu0
    %v1815 = vadd.f32 %v1726, %v1814
    %v1816 = vpop.f32.mrf.mxu0
    %v1817 = vadd.f32 %v1728, %v1816
    %1818 = vmatmul.bf16.gmra.mxu0 %v1619
    %v1819 = vpop.f32.mrf.mxu0
    %v1820 = vadd.f32 %v1731, %v1819
    %v1821 = vpop.f32.mrf.mxu0
    %v1822 = vadd.f32 %v1733, %v1821
    %1823 = vmatmul.bf16.gmra.mxu0 %v1621
    %v1824 = vpop.f32.mrf.mxu0
    %v1825 = vadd.f32 %v1736, %v1824
    %v1826 = vpop.f32.mrf.mxu0
    %v1827 = vadd.f32 %v1738, %v1826
    %1828 = vmatmul.bf16.gmra.mxu0 %v1623
    %v1829 = vpop.f32.mrf.mxu0
    %v1830 = vadd.f32 %v1741, %v1829
    %v1831 = vpop.f32.mrf.mxu0
    %v1832 = vadd.f32 %v1743, %v1831
    %1833 = vdwg.mxu0
    %vm1834 = vcmp.gt.f32.partialorder %v1755, 0.0
    %vm1835 = vcmp.gt.f32.partialorder %v1757, 0.0
    %vm1836 = vcmp.gt.f32.partialorder %v1760, 0.0
    %vm1837 = vcmp.gt.f32.partialorder %v1762, 0.0
    %vm1838 = vcmp.gt.f32.partialorder %v1765, 0.0
    %vm1839 = vcmp.gt.f32.partialorder %v1767, 0.0
    %vm1840 = vcmp.gt.f32.partialorder %v1770, 0.0
    %vm1841 = vcmp.gt.f32.partialorder %v1772, 0.0
    %vm1842 = vcmp.gt.f32.partialorder %v1775, 0.0
    %vm1843 = vcmp.gt.f32.partialorder %v1777, 0.0
    %vm1844 = vcmp.gt.f32.partialorder %v1780, 0.0
    %vm1845 = vcmp.gt.f32.partialorder %v1782, 0.0
    %vm1846 = vcmp.gt.f32.partialorder %v1785, 0.0
    %vm1847 = vcmp.gt.f32.partialorder %v1787, 0.0
    %vm1848 = vcmp.gt.f32.partialorder %v1790, 0.0
    %vm1849 = vcmp.gt.f32.partialorder %v1792, 0.0
    %vm1850 = vcmp.gt.f32.partialorder %v1795, 0.0
    %vm1851 = vcmp.gt.f32.partialorder %v1797, 0.0
    %vm1852 = vcmp.gt.f32.partialorder %v1800, 0.0
    %vm1853 = vcmp.gt.f32.partialorder %v1802, 0.0
    %vm1854 = vcmp.gt.f32.partialorder %v1805, 0.0
    %vm1855 = vcmp.gt.f32.partialorder %v1807, 0.0
    %vm1856 = vcmp.gt.f32.partialorder %v1810, 0.0
    %vm1857 = vcmp.gt.f32.partialorder %v1812, 0.0
    %vm1858 = vcmp.gt.f32.partialorder %v1815, 0.0
    %vm1859 = vcmp.gt.f32.partialorder %v1817, 0.0
    %vm1860 = vcmp.gt.f32.partialorder %v1820, 0.0
    %vm1861 = vcmp.gt.f32.partialorder %v1822, 0.0
    %vm1862 = vcmp.gt.f32.partialorder %v1825, 0.0
    %vm1863 = vcmp.gt.f32.partialorder %v1827, 0.0
    %vm1864 = vcmp.gt.f32.partialorder %v1830, 0.0
    %vm1865 = vcmp.gt.f32.partialorder %v1832, 0.0
    %v1866 = vmin.f32 %v1755, 0.0
    %v1867 = vmin.f32 %v1757, 0.0
    %v1868 = vmin.f32 %v1760, 0.0
    %v1869 = vmin.f32 %v1762, 0.0
    %v1870 = vmin.f32 %v1765, 0.0
    %v1871 = vmin.f32 %v1767, 0.0
    %v1872 = vmin.f32 %v1770, 0.0
    %v1873 = vmin.f32 %v1772, 0.0
    %v1874 = vmin.f32 %v1775, 0.0
    %v1875 = vmin.f32 %v1777, 0.0
    %v1876 = vmin.f32 %v1780, 0.0
    %v1877 = vmin.f32 %v1782, 0.0
    %v1878 = vmin.f32 %v1785, 0.0
    %v1879 = vmin.f32 %v1787, 0.0
    %v1880 = vmin.f32 %v1790, 0.0
    %v1881 = vmin.f32 %v1792, 0.0
    %v1882 = vmin.f32 %v1795, 0.0
    %v1883 = vmin.f32 %v1797, 0.0
    %v1884 = vmin.f32 %v1800, 0.0
    %v1885 = vmin.f32 %v1802, 0.0
    %v1886 = vmin.f32 %v1805, 0.0
    %v1887 = vmin.f32 %v1807, 0.0
    %v1888 = vmin.f32 %v1810, 0.0
    %v1889 = vmin.f32 %v1812, 0.0
    %v1890 = vmin.f32 %v1815, 0.0
    %v1891 = vmin.f32 %v1817, 0.0
    %v1892 = vmin.f32 %v1820, 0.0
    %v1893 = vmin.f32 %v1822, 0.0
    %v1894 = vmin.f32 %v1825, 0.0
    %v1895 = vmin.f32 %v1827, 0.0
    %v1896 = vmin.f32 %v1830, 0.0
    %v1897 = vmin.f32 %v1832, 0.0
    %v1898 = vmul.f32 %v1866, 1.442695
    %v1899 = vpow.pop %v1898
    %v1900 = vmul.f32 %v1867, 1.442695
    %v1901 = vpow.pop %v1900
    %v1902 = vmul.f32 %v1868, 1.442695
    %v1903 = vpow.pop %v1902
    %v1904 = vmul.f32 %v1869, 1.442695
    %v1905 = vpow.pop %v1904
    %v1906 = vmul.f32 %v1870, 1.442695
    %v1907 = vpow.pop %v1906
    %v1908 = vmul.f32 %v1871, 1.442695
    %v1909 = vpow.pop %v1908
    %v1910 = vmul.f32 %v1872, 1.442695
    %v1911 = vpow.pop %v1910
    %v1912 = vmul.f32 %v1873, 1.442695
    %v1913 = vpow.pop %v1912
    %v1914 = vmul.f32 %v1874, 1.442695
    %v1915 = vpow.pop %v1914
    %v1916 = vmul.f32 %v1875, 1.442695
    %v1917 = vpow.pop %v1916
    %v1918 = vmul.f32 %v1876, 1.442695
    %v1919 = vpow.pop %v1918
    %v1920 = vmul.f32 %v1877, 1.442695
    %v1921 = vpow.pop %v1920
    %v1922 = vmul.f32 %v1878, 1.442695
    %v1923 = vpow.pop %v1922
    %v1924 = vmul.f32 %v1879, 1.442695
    %v1925 = vpow.pop %v1924
    %v1926 = vmul.f32 %v1880, 1.442695
    %v1927 = vpow.pop %v1926
    %v1928 = vmul.f32 %v1881, 1.442695
    %v1929 = vpow.pop %v1928
    %v1930 = vmul.f32 %v1882, 1.442695
    %v1931 = vpow.pop %v1930
    %v1932 = vmul.f32 %v1883, 1.442695
    %v1933 = vpow.pop %v1932
    %v1934 = vmul.f32 %v1884, 1.442695
    %v1935 = vpow.pop %v1934
    %v1936 = vmul.f32 %v1885, 1.442695
    %v1937 = vpow.pop %v1936
    %v1938 = vmul.f32 %v1886, 1.442695
    %v1939 = vpow.pop %v1938
    %v1940 = vmul.f32 %v1887, 1.442695
    %v1941 = vpow.pop %v1940
    %v1942 = vmul.f32 %v1888, 1.442695
    %v1943 = vpow.pop %v1942
    %v1944 = vmul.f32 %v1889, 1.442695
    %v1945 = vpow.pop %v1944
    %v1946 = vmul.f32 %v1890, 1.442695
    %v1947 = vpow.pop %v1946
    %v1948 = vmul.f32 %v1891, 1.442695
    %v1949 = vpow.pop %v1948
    %v1950 = vmul.f32 %v1892, 1.442695
    %v1951 = vpow.pop %v1950
    %v1952 = vmul.f32 %v1893, 1.442695
    %v1953 = vpow.pop %v1952
    %v1954 = vmul.f32 %v1894, 1.442695
    %v1955 = vpow.pop %v1954
    %v1956 = vmul.f32 %v1895, 1.442695
    %v1957 = vpow.pop %v1956
    %v1958 = vmul.f32 %v1896, 1.442695
    %v1959 = vpow.pop %v1958
    %v1960 = vmul.f32 %v1897, 1.442695
    %v1961 = vpow.pop %v1960
    %v1962 = vsub.f32 %v1899, 1.0
    %v1963 = vsub.f32 %v1901, 1.0
    %v1964 = vsub.f32 %v1903, 1.0
    %v1965 = vsub.f32 %v1905, 1.0
    %v1966 = vsub.f32 %v1907, 1.0
    %v1967 = vsub.f32 %v1909, 1.0
    %v1968 = vsub.f32 %v1911, 1.0
    %v1969 = vsub.f32 %v1913, 1.0
    %v1970 = vsub.f32 %v1915, 1.0
    %v1971 = vsub.f32 %v1917, 1.0
    %v1972 = vsub.f32 %v1919, 1.0
    %v1973 = vsub.f32 %v1921, 1.0
    %v1974 = vsub.f32 %v1923, 1.0
    %v1975 = vsub.f32 %v1925, 1.0
    %v1976 = vsub.f32 %v1927, 1.0
    %v1977 = vsub.f32 %v1929, 1.0
    %v1978 = vsub.f32 %v1931, 1.0
    %v1979 = vsub.f32 %v1933, 1.0
    %v1980 = vsub.f32 %v1935, 1.0
    %v1981 = vsub.f32 %v1937, 1.0
    %v1982 = vsub.f32 %v1939, 1.0
    %v1983 = vsub.f32 %v1941, 1.0
    %v1984 = vsub.f32 %v1943, 1.0
    %v1985 = vsub.f32 %v1945, 1.0
    %v1986 = vsub.f32 %v1947, 1.0
    %v1987 = vsub.f32 %v1949, 1.0
    %v1988 = vsub.f32 %v1951, 1.0
    %v1989 = vsub.f32 %v1953, 1.0
    %v1990 = vsub.f32 %v1955, 1.0
    %v1991 = vsub.f32 %v1957, 1.0
    %v1992 = vsub.f32 %v1959, 1.0
    %v1993 = vsub.f32 %v1961, 1.0
    %v1994 = vsel %vm1834, %v1755, %v1962
    %v1995 = vsel %vm1835, %v1757, %v1963
    %v1996 = vsel %vm1836, %v1760, %v1964
    %v1997 = vsel %vm1837, %v1762, %v1965
    %v1998 = vsel %vm1838, %v1765, %v1966
    %v1999 = vsel %vm1839, %v1767, %v1967
    %v2000 = vsel %vm1840, %v1770, %v1968
    %v2001 = vsel %vm1841, %v1772, %v1969
    %v2002 = vsel %vm1842, %v1775, %v1970
    %v2003 = vsel %vm1843, %v1777, %v1971
    %v2004 = vsel %vm1844, %v1780, %v1972
    %v2005 = vsel %vm1845, %v1782, %v1973
    %v2006 = vsel %vm1846, %v1785, %v1974
    %v2007 = vsel %vm1847, %v1787, %v1975
    %v2008 = vsel %vm1848, %v1790, %v1976
    %v2009 = vsel %vm1849, %v1792, %v1977
    %v2010 = vsel %vm1850, %v1795, %v1978
    %v2011 = vsel %vm1851, %v1797, %v1979
    %v2012 = vsel %vm1852, %v1800, %v1980
    %v2013 = vsel %vm1853, %v1802, %v1981
    %v2014 = vsel %vm1854, %v1805, %v1982
    %v2015 = vsel %vm1855, %v1807, %v1983
    %v2016 = vsel %vm1856, %v1810, %v1984
    %v2017 = vsel %vm1857, %v1812, %v1985
    %v2018 = vsel %vm1858, %v1815, %v1986
    %v2019 = vsel %vm1859, %v1817, %v1987
    %v2020 = vsel %vm1860, %v1820, %v1988
    %v2021 = vsel %vm1861, %v1822, %v1989
    %v2022 = vsel %vm1862, %v1825, %v1990
    %v2023 = vsel %vm1863, %v1827, %v1991
    %v2024 = vsel %vm1864, %v1830, %v1992
    %v2025 = vsel %vm1865, %v1832, %v1993
    %v2026 = vld [vmem:[%s5] sm:$0xff]
    %v2027 = vld [vmem:[%s5 + $0x8] sm:$0xff]
    %v2028 = vld [vmem:[%s5 + $0x10] sm:$0xff]
    %v2029 = vld [vmem:[%s5 + $0x18] sm:$0xff]
    %v2030 = vld [vmem:[%s5 + $0x20] sm:$0xff]
    %v2031 = vld [vmem:[%s5 + $0x28] sm:$0xff]
    %v2032 = vld [vmem:[%s5 + $0x30] sm:$0xff]
    %v2033 = vld [vmem:[%s5 + $0x38] sm:$0xff]
    %v2034 = vld [vmem:[%s5 + $0x40] sm:$0xff]
    %v2035 = vld [vmem:[%s5 + $0x48] sm:$0xff]
    %v2036 = vld [vmem:[%s5 + $0x50] sm:$0xff]
    %v2037 = vld [vmem:[%s5 + $0x58] sm:$0xff]
    %v2038 = vld [vmem:[%s5 + $0x60] sm:$0xff]
    %v2039 = vld [vmem:[%s5 + $0x68] sm:$0xff]
    %v2040 = vld [vmem:[%s5 + $0x70] sm:$0xff]
    %v2041 = vld [vmem:[%s5 + $0x78] sm:$0xff]
    %v2042 = vld [vmem:[%s5 + $0x80] sm:$0xff]
    %v2043 = vld [vmem:[%s5 + $0x88] sm:$0xff]
    %v2044 = vld [vmem:[%s5 + $0x90] sm:$0xff]
    %v2045 = vld [vmem:[%s5 + $0x98] sm:$0xff]
    %v2046 = vld [vmem:[%s5 + $0xa0] sm:$0xff]
    %v2047 = vld [vmem:[%s5 + $0xa8] sm:$0xff]
    %v2048 = vld [vmem:[%s5 + $0xb0] sm:$0xff]
    %v2049 = vld [vmem:[%s5 + $0xb8] sm:$0xff]
    %v2050 = vld [vmem:[%s5 + $0xc0] sm:$0xff]
    %v2051 = vld [vmem:[%s5 + $0xc8] sm:$0xff]
    %v2052 = vld [vmem:[%s5 + $0xd0] sm:$0xff]
    %v2053 = vld [vmem:[%s5 + $0xd8] sm:$0xff]
    %v2054 = vld [vmem:[%s5 + $0xe0] sm:$0xff]
    %v2055 = vld [vmem:[%s5 + $0xe8] sm:$0xff]
    %v2056 = vld [vmem:[%s5 + $0xf0] sm:$0xff]
    %v2057 = vld [vmem:[%s5 + $0xf8] sm:$0xff]
    %v2058 = vpack.c.bf16 %v1995, %v1994
    %v2059 = vpack.c.bf16 %v1997, %v1996
    %v2060 = vpack.c.bf16 %v1999, %v1998
    %v2061 = vpack.c.bf16 %v2001, %v2000
    %v2062 = vpack.c.bf16 %v2003, %v2002
    %v2063 = vpack.c.bf16 %v2005, %v2004
    %v2064 = vpack.c.bf16 %v2007, %v2006
    %v2065 = vpack.c.bf16 %v2009, %v2008
    %v2066 = vpack.c.bf16 %v2011, %v2010
    %v2067 = vpack.c.bf16 %v2013, %v2012
    %v2068 = vpack.c.bf16 %v2015, %v2014
    %v2069 = vpack.c.bf16 %v2017, %v2016
    %v2070 = vpack.c.bf16 %v2019, %v2018
    %v2071 = vpack.c.bf16 %v2021, %v2020
    %v2072 = vpack.c.bf16 %v2023, %v2022
    %v2073 = vpack.c.bf16 %v2025, %v2024
    %v2074 = vld [vmem:[%s6] sm:$0xff]
    %v2075 = vld [vmem:[%s6 + $0x8] sm:$0xff]
    %v2076 = vld [vmem:[%s6 + $0x10] sm:$0xff]
    %v2077 = vld [vmem:[%s6 + $0x18] sm:$0xff]
    %v2078 = vld [vmem:[%s6 + $0x20] sm:$0xff]
    %v2079 = vld [vmem:[%s6 + $0x28] sm:$0xff]
    %v2080 = vld [vmem:[%s6 + $0x30] sm:$0xff]
    %v2081 = vld [vmem:[%s6 + $0x38] sm:$0xff]
    %v2082 = vld [vmem:[%s6 + $0x40] sm:$0xff]
    %v2083 = vld [vmem:[%s6 + $0x48] sm:$0xff]
    %v2084 = vld [vmem:[%s6 + $0x50] sm:$0xff]
    %v2085 = vld [vmem:[%s6 + $0x58] sm:$0xff]
    %v2086 = vld [vmem:[%s6 + $0x60] sm:$0xff]
    %v2087 = vld [vmem:[%s6 + $0x68] sm:$0xff]
    %v2088 = vld [vmem:[%s6 + $0x70] sm:$0xff]
    %v2089 = vld [vmem:[%s6 + $0x78] sm:$0xff]
    %v2090 = vld [vmem:[%s6 + $0x80] sm:$0xff]
    %v2091 = vld [vmem:[%s6 + $0x88] sm:$0xff]
    %v2092 = vld [vmem:[%s6 + $0x90] sm:$0xff]
    %v2093 = vld [vmem:[%s6 + $0x98] sm:$0xff]
    %v2094 = vld [vmem:[%s6 + $0xa0] sm:$0xff]
    %v2095 = vld [vmem:[%s6 + $0xa8] sm:$0xff]
    %v2096 = vld [vmem:[%s6 + $0xb0] sm:$0xff]
    %v2097 = vld [vmem:[%s6 + $0xb8] sm:$0xff]
    %v2098 = vld [vmem:[%s6 + $0xc0] sm:$0xff]
    %v2099 = vld [vmem:[%s6 + $0xc8] sm:$0xff]
    %v2100 = vld [vmem:[%s6 + $0xd0] sm:$0xff]
    %v2101 = vld [vmem:[%s6 + $0xd8] sm:$0xff]
    %v2102 = vld [vmem:[%s6 + $0xe0] sm:$0xff]
    %v2103 = vld [vmem:[%s6 + $0xe8] sm:$0xff]
    %v2104 = vld [vmem:[%s6 + $0xf0] sm:$0xff]
    %v2105 = vld [vmem:[%s6 + $0xf8] sm:$0xff]
    %2107 = vset.pattern.permute.xlu0 0
    %2108 = vperm.xlu0 %2107, %v2074
    %v2109 = vpop.permute.xlu0 %2108
    %2112 = vset.pattern.permute.xlu0 0
    %2113 = vperm.xlu0 %2112, %v2075
    %v2114 = vpop.permute.xlu0 %2113
    %2117 = vset.pattern.permute.xlu0 0
    %2118 = vperm.xlu0 %2117, %v2076
    %v2119 = vpop.permute.xlu0 %2118
    %2122 = vset.pattern.permute.xlu0 0
    %2123 = vperm.xlu0 %2122, %v2077
    %v2124 = vpop.permute.xlu0 %2123
    %2127 = vset.pattern.permute.xlu0 0
    %2128 = vperm.xlu0 %2127, %v2078
    %v2129 = vpop.permute.xlu0 %2128
    %2132 = vset.pattern.permute.xlu0 0
    %2133 = vperm.xlu0 %2132, %v2079
    %v2134 = vpop.permute.xlu0 %2133
    %2137 = vset.pattern.permute.xlu0 0
    %2138 = vperm.xlu0 %2137, %v2080
    %v2139 = vpop.permute.xlu0 %2138
    %2142 = vset.pattern.permute.xlu0 0
    %2143 = vperm.xlu0 %2142, %v2081
    %v2144 = vpop.permute.xlu0 %2143
    %2147 = vset.pattern.permute.xlu0 0
    %2148 = vperm.xlu0 %2147, %v2082
    %v2149 = vpop.permute.xlu0 %2148
    %2152 = vset.pattern.permute.xlu0 0
    %2153 = vperm.xlu0 %2152, %v2083
    %v2154 = vpop.permute.xlu0 %2153
    %2157 = vset.pattern.permute.xlu0 0
    %2158 = vperm.xlu0 %2157, %v2084
    %v2159 = vpop.permute.xlu0 %2158
    %2162 = vset.pattern.permute.xlu0 0
    %2163 = vperm.xlu0 %2162, %v2085
    %v2164 = vpop.permute.xlu0 %2163
    %2167 = vset.pattern.permute.xlu0 0
    %2168 = vperm.xlu0 %2167, %v2086
    %v2169 = vpop.permute.xlu0 %2168
    %2172 = vset.pattern.permute.xlu0 0
    %2173 = vperm.xlu0 %2172, %v2087
    %v2174 = vpop.permute.xlu0 %2173
    %2177 = vset.pattern.permute.xlu0 0
    %2178 = vperm.xlu0 %2177, %v2088
    %v2179 = vpop.permute.xlu0 %2178
    %2182 = vset.pattern.permute.xlu0 0
    %2183 = vperm.xlu0 %2182, %v2089
    %v2184 = vpop.permute.xlu0 %2183
    %2187 = vset.pattern.permute.xlu0 0
    %2188 = vperm.xlu0 %2187, %v2090
    %v2189 = vpop.permute.xlu0 %2188
    %2192 = vset.pattern.permute.xlu0 0
    %2193 = vperm.xlu0 %2192, %v2091
    %v2194 = vpop.permute.xlu0 %2193
    %2197 = vset.pattern.permute.xlu0 0
    %2198 = vperm.xlu0 %2197, %v2092
    %v2199 = vpop.permute.xlu0 %2198
    %2202 = vset.pattern.permute.xlu0 0
    %2203 = vperm.xlu0 %2202, %v2093
    %v2204 = vpop.permute.xlu0 %2203
    %2207 = vset.pattern.permute.xlu0 0
    %2208 = vperm.xlu0 %2207, %v2094
    %v2209 = vpop.permute.xlu0 %2208
    %2212 = vset.pattern.permute.xlu0 0
    %2213 = vperm.xlu0 %2212, %v2095
    %v2214 = vpop.permute.xlu0 %2213
    %2217 = vset.pattern.permute.xlu0 0
    %2218 = vperm.xlu0 %2217, %v2096
    %v2219 = vpop.permute.xlu0 %2218
    %2222 = vset.pattern.permute.xlu0 0
    %2223 = vperm.xlu0 %2222, %v2097
    %v2224 = vpop.permute.xlu0 %2223
    %2227 = vset.pattern.permute.xlu0 0
    %2228 = vperm.xlu0 %2227, %v2098
    %v2229 = vpop.permute.xlu0 %2228
    %2232 = vset.pattern.permute.xlu0 0
    %2233 = vperm.xlu0 %2232, %v2099
    %v2234 = vpop.permute.xlu0 %2233
    %2237 = vset.pattern.permute.xlu0 0
    %2238 = vperm.xlu0 %2237, %v2100
    %v2239 = vpop.permute.xlu0 %2238
    %2242 = vset.pattern.permute.xlu0 0
    %2243 = vperm.xlu0 %2242, %v2101
    %v2244 = vpop.permute.xlu0 %2243
    %2247 = vset.pattern.permute.xlu0 0
    %2248 = vperm.xlu0 %2247, %v2102
    %v2249 = vpop.permute.xlu0 %2248
    %2252 = vset.pattern.permute.xlu0 0
    %2253 = vperm.xlu0 %2252, %v2103
    %v2254 = vpop.permute.xlu0 %2253
    %2257 = vset.pattern.permute.xlu0 0
    %2258 = vperm.xlu0 %2257, %v2104
    %v2259 = vpop.permute.xlu0 %2258
    %2262 = vset.pattern.permute.xlu0 0
    %2263 = vperm.xlu0 %2262, %v2105
    %v2264 = vpop.permute.xlu0 %2263
    %v2298 = vunpack.c.l.b16 %v2026
    %v2299 = vunpack.c.h.b16 %v2026
    %v2300 = vunpack.c.l.b16 %v2027
    %v2301 = vunpack.c.h.b16 %v2027
    %v2302 = vunpack.c.l.b16 %v2028
    %v2303 = vunpack.c.h.b16 %v2028
    %v2304 = vunpack.c.l.b16 %v2029
    %v2305 = vunpack.c.h.b16 %v2029
    %v2306 = vunpack.c.l.b16 %v2030
    %v2307 = vunpack.c.h.b16 %v2030
    %v2308 = vunpack.c.l.b16 %v2031
    %v2309 = vunpack.c.h.b16 %v2031
    %v2310 = vunpack.c.l.b16 %v2032
    %v2311 = vunpack.c.h.b16 %v2032
    %v2312 = vunpack.c.l.b16 %v2033
    %v2313 = vunpack.c.h.b16 %v2033
    %v2314 = vunpack.c.l.b16 %v2034
    %v2315 = vunpack.c.h.b16 %v2034
    %v2316 = vunpack.c.l.b16 %v2035
    %v2317 = vunpack.c.h.b16 %v2035
    %v2318 = vunpack.c.l.b16 %v2036
    %v2319 = vunpack.c.h.b16 %v2036
    %v2320 = vunpack.c.l.b16 %v2037
    %v2321 = vunpack.c.h.b16 %v2037
    %v2322 = vunpack.c.l.b16 %v2038
    %v2323 = vunpack.c.h.b16 %v2038
    %v2324 = vunpack.c.l.b16 %v2039
    %v2325 = vunpack.c.h.b16 %v2039
    %v2326 = vunpack.c.l.b16 %v2040
    %v2327 = vunpack.c.h.b16 %v2040
    %v2328 = vunpack.c.l.b16 %v2041
    %v2329 = vunpack.c.h.b16 %v2041
    %v2330 = vunpack.c.l.b16 %v2042
    %v2331 = vunpack.c.h.b16 %v2042
    %v2332 = vunpack.c.l.b16 %v2043
    %v2333 = vunpack.c.h.b16 %v2043
    %v2334 = vunpack.c.l.b16 %v2044
    %v2335 = vunpack.c.h.b16 %v2044
    %v2336 = vunpack.c.l.b16 %v2045
    %v2337 = vunpack.c.h.b16 %v2045
    %v2338 = vunpack.c.l.b16 %v2046
    %v2339 = vunpack.c.h.b16 %v2046
    %v2340 = vunpack.c.l.b16 %v2047
    %v2341 = vunpack.c.h.b16 %v2047
    %v2342 = vunpack.c.l.b16 %v2048
    %v2343 = vunpack.c.h.b16 %v2048
    %v2344 = vunpack.c.l.b16 %v2049
    %v2345 = vunpack.c.h.b16 %v2049
    %v2346 = vunpack.c.l.b16 %v2050
    %v2347 = vunpack.c.h.b16 %v2050
    %v2348 = vunpack.c.l.b16 %v2051
    %v2349 = vunpack.c.h.b16 %v2051
    %v2350 = vunpack.c.l.b16 %v2052
    %v2351 = vunpack.c.h.b16 %v2052
    %v2352 = vunpack.c.l.b16 %v2053
    %v2353 = vunpack.c.h.b16 %v2053
    %v2354 = vunpack.c.l.b16 %v2054
    %v2355 = vunpack.c.h.b16 %v2054
    %v2356 = vunpack.c.l.b16 %v2055
    %v2357 = vunpack.c.h.b16 %v2055
    %v2358 = vunpack.c.l.b16 %v2056
    %v2359 = vunpack.c.h.b16 %v2056
    %v2360 = vunpack.c.l.b16 %v2057
    %v2361 = vunpack.c.h.b16 %v2057
    %v2362 = vpack.c.b16 %v2300, %v2298
    %v2363 = vpack.c.b16 %v2301, %v2299
    %v2364 = vpack.c.b16 %v2304, %v2302
    %v2365 = vpack.c.b16 %v2305, %v2303
    %v2366 = vpack.c.b16 %v2308, %v2306
    %v2367 = vpack.c.b16 %v2309, %v2307
    %v2368 = vpack.c.b16 %v2312, %v2310
    %v2369 = vpack.c.b16 %v2313, %v2311
    %v2370 = vpack.c.b16 %v2316, %v2314
    %v2371 = vpack.c.b16 %v2317, %v2315
    %v2372 = vpack.c.b16 %v2320, %v2318
    %v2373 = vpack.c.b16 %v2321, %v2319
    %v2374 = vpack.c.b16 %v2324, %v2322
    %v2375 = vpack.c.b16 %v2325, %v2323
    %v2376 = vpack.c.b16 %v2328, %v2326
    %v2377 = vpack.c.b16 %v2329, %v2327
    %v2378 = vpack.c.b16 %v2332, %v2330
    %v2379 = vpack.c.b16 %v2333, %v2331
    %v2380 = vpack.c.b16 %v2336, %v2334
    %v2381 = vpack.c.b16 %v2337, %v2335
    %v2382 = vpack.c.b16 %v2340, %v2338
    %v2383 = vpack.c.b16 %v2341, %v2339
    %v2384 = vpack.c.b16 %v2344, %v2342
    %v2385 = vpack.c.b16 %v2345, %v2343
    %v2386 = vpack.c.b16 %v2348, %v2346
    %v2387 = vpack.c.b16 %v2349, %v2347
    %v2388 = vpack.c.b16 %v2352, %v2350
    %v2389 = vpack.c.b16 %v2353, %v2351
    %v2390 = vpack.c.b16 %v2356, %v2354
    %v2391 = vpack.c.b16 %v2357, %v2355
    %v2392 = vpack.c.b16 %v2360, %v2358
    %v2393 = vpack.c.b16 %v2361, %v2359
    %2426 = vmatpush.bf16.msra.mxu0 %v2065
    %2427 = vmatpush.bf16.msra.mxu0 %v2064
    %2428 = vmatpush.bf16.msra.mxu0 %v2063
    %2429 = vmatpush.bf16.msra.mxu0 %v2062
    %2430 = vmatpush.bf16.msra.mxu0 %v2061
    %2431 = vmatpush.bf16.msra.mxu0 %v2060
    %2432 = vmatpush.bf16.msra.mxu0 %v2059
    %2433 = vmatpush.bf16.msra.mxu0 %v2058
    %2434 = vmatmul.bf16.gmra.mxu0 %v2362
    %v2435 = vpop.f32.mrf.mxu0
    %v2436 = vadd.f32 %v2109, %v2435
    %v2437 = vpop.f32.mrf.mxu0
    %v2438 = vadd.f32 %v2114, %v2437
    %2439 = vmatmul.bf16.gmra.mxu0 %v2364
    %v2440 = vpop.f32.mrf.mxu0
    %v2441 = vadd.f32 %v2119, %v2440
    %v2442 = vpop.f32.mrf.mxu0
    %v2443 = vadd.f32 %v2124, %v2442
    %2444 = vmatmul.bf16.gmra.mxu0 %v2366
    %v2445 = vpop.f32.mrf.mxu0
    %v2446 = vadd.f32 %v2129, %v2445
    %v2447 = vpop.f32.mrf.mxu0
    %v2448 = vadd.f32 %v2134, %v2447
    %2449 = vmatmul.bf16.gmra.mxu0 %v2368
    %v2450 = vpop.f32.mrf.mxu0
    %v2451 = vadd.f32 %v2139, %v2450
    %v2452 = vpop.f32.mrf.mxu0
    %v2453 = vadd.f32 %v2144, %v2452
    %2454 = vmatmul.bf16.gmra.mxu0 %v2370
    %v2455 = vpop.f32.mrf.mxu0
    %v2456 = vadd.f32 %v2149, %v2455
    %v2457 = vpop.f32.mrf.mxu0
    %v2458 = vadd.f32 %v2154, %v2457
    %2459 = vmatmul.bf16.gmra.mxu0 %v2372
    %v2460 = vpop.f32.mrf.mxu0
    %v2461 = vadd.f32 %v2159, %v2460
    %v2462 = vpop.f32.mrf.mxu0
    %v2463 = vadd.f32 %v2164, %v2462
    %2464 = vmatmul.bf16.gmra.mxu0 %v2374
    %v2465 = vpop.f32.mrf.mxu0
    %v2466 = vadd.f32 %v2169, %v2465
    %v2467 = vpop.f32.mrf.mxu0
    %v2468 = vadd.f32 %v2174, %v2467
    %2469 = vmatmul.bf16.gmra.mxu0 %v2376
    %v2470 = vpop.f32.mrf.mxu0
    %v2471 = vadd.f32 %v2179, %v2470
    %v2472 = vpop.f32.mrf.mxu0
    %v2473 = vadd.f32 %v2184, %v2472
    %2474 = vmatmul.bf16.gmra.mxu0 %v2378
    %v2475 = vpop.f32.mrf.mxu0
    %v2476 = vadd.f32 %v2189, %v2475
    %v2477 = vpop.f32.mrf.mxu0
    %v2478 = vadd.f32 %v2194, %v2477
    %2479 = vmatmul.bf16.gmra.mxu0 %v2380
    %v2480 = vpop.f32.mrf.mxu0
    %v2481 = vadd.f32 %v2199, %v2480
    %v2482 = vpop.f32.mrf.mxu0
    %v2483 = vadd.f32 %v2204, %v2482
    %2484 = vmatmul.bf16.gmra.mxu0 %v2382
    %v2485 = vpop.f32.mrf.mxu0
    %v2486 = vadd.f32 %v2209, %v2485
    %v2487 = vpop.f32.mrf.mxu0
    %v2488 = vadd.f32 %v2214, %v2487
    %2489 = vmatmul.bf16.gmra.mxu0 %v2384
    %v2490 = vpop.f32.mrf.mxu0
    %v2491 = vadd.f32 %v2219, %v2490
    %v2492 = vpop.f32.mrf.mxu0
    %v2493 = vadd.f32 %v2224, %v2492
    %2494 = vmatmul.bf16.gmra.mxu0 %v2386
    %v2495 = vpop.f32.mrf.mxu0
    %v2496 = vadd.f32 %v2229, %v2495
    %v2497 = vpop.f32.mrf.mxu0
    %v2498 = vadd.f32 %v2234, %v2497
    %2499 = vmatmul.bf16.gmra.mxu0 %v2388
    %v2500 = vpop.f32.mrf.mxu0
    %v2501 = vadd.f32 %v2239, %v2500
    %v2502 = vpop.f32.mrf.mxu0
    %v2503 = vadd.f32 %v2244, %v2502
    %2504 = vmatmul.bf16.gmra.mxu0 %v2390
    %v2505 = vpop.f32.mrf.mxu0
    %v2506 = vadd.f32 %v2249, %v2505
    %v2507 = vpop.f32.mrf.mxu0
    %v2508 = vadd.f32 %v2254, %v2507
    %2509 = vmatmul.bf16.gmra.mxu0 %v2392
    %v2510 = vpop.f32.mrf.mxu0
    %v2511 = vadd.f32 %v2259, %v2510
    %v2512 = vpop.f32.mrf.mxu0
    %v2513 = vadd.f32 %v2264, %v2512
    %2514 = vdwg.mxu0
    %2515 = vmatpush.bf16.msra.mxu0 %v2073
    %2516 = vmatpush.bf16.msra.mxu0 %v2072
    %2517 = vmatpush.bf16.msra.mxu0 %v2071
    %2518 = vmatpush.bf16.msra.mxu0 %v2070
    %2519 = vmatpush.bf16.msra.mxu0 %v2069
    %2520 = vmatpush.bf16.msra.mxu0 %v2068
    %2521 = vmatpush.bf16.msra.mxu0 %v2067
    %2522 = vmatpush.bf16.msra.mxu0 %v2066
    %2523 = vmatmul.bf16.gmra.mxu0 %v2363
    %v2524 = vpop.f32.mrf.mxu0
    %v2525 = vadd.f32 %v2436, %v2524
    %v2526 = vpop.f32.mrf.mxu0
    %v2527 = vadd.f32 %v2438, %v2526
    %2528 = vmatmul.bf16.gmra.mxu0 %v2365
    %v2529 = vpop.f32.mrf.mxu0
    %v2530 = vadd.f32 %v2441, %v2529
    %v2531 = vpop.f32.mrf.mxu0
    %v2532 = vadd.f32 %v2443, %v2531
    %2533 = vmatmul.bf16.gmra.mxu0 %v2367
    %v2534 = vpop.f32.mrf.mxu0
    %v2535 = vadd.f32 %v2446, %v2534
    %v2536 = vpop.f32.mrf.mxu0
    %v2537 = vadd.f32 %v2448, %v2536
    %2538 = vmatmul.bf16.gmra.mxu0 %v2369
    %v2539 = vpop.f32.mrf.mxu0
    %v2540 = vadd.f32 %v2451, %v2539
    %v2541 = vpop.f32.mrf.mxu0
    %v2542 = vadd.f32 %v2453, %v2541
    %2543 = vmatmul.bf16.gmra.mxu0 %v2371
    %v2544 = vpop.f32.mrf.mxu0
    %v2545 = vadd.f32 %v2456, %v2544
    %v2546 = vpop.f32.mrf.mxu0
    %v2547 = vadd.f32 %v2458, %v2546
    %2548 = vmatmul.bf16.gmra.mxu0 %v2373
    %v2549 = vpop.f32.mrf.mxu0
    %v2550 = vadd.f32 %v2461, %v2549
    %v2551 = vpop.f32.mrf.mxu0
    %v2552 = vadd.f32 %v2463, %v2551
    %2553 = vmatmul.bf16.gmra.mxu0 %v2375
    %v2554 = vpop.f32.mrf.mxu0
    %v2555 = vadd.f32 %v2466, %v2554
    %v2556 = vpop.f32.mrf.mxu0
    %v2557 = vadd.f32 %v2468, %v2556
    %2558 = vmatmul.bf16.gmra.mxu0 %v2377
    %v2559 = vpop.f32.mrf.mxu0
    %v2560 = vadd.f32 %v2471, %v2559
    %v2561 = vpop.f32.mrf.mxu0
    %v2562 = vadd.f32 %v2473, %v2561
    %2563 = vmatmul.bf16.gmra.mxu0 %v2379
    %v2564 = vpop.f32.mrf.mxu0
    %v2565 = vadd.f32 %v2476, %v2564
    %v2566 = vpop.f32.mrf.mxu0
    %v2567 = vadd.f32 %v2478, %v2566
    %2568 = vmatmul.bf16.gmra.mxu0 %v2381
    %v2569 = vpop.f32.mrf.mxu0
    %v2570 = vadd.f32 %v2481, %v2569
    %v2571 = vpop.f32.mrf.mxu0
    %v2572 = vadd.f32 %v2483, %v2571
    %2573 = vmatmul.bf16.gmra.mxu0 %v2383
    %v2574 = vpop.f32.mrf.mxu0
    %v2575 = vadd.f32 %v2486, %v2574
    %v2576 = vpop.f32.mrf.mxu0
    %v2577 = vadd.f32 %v2488, %v2576
    %2578 = vmatmul.bf16.gmra.mxu0 %v2385
    %v2579 = vpop.f32.mrf.mxu0
    %v2580 = vadd.f32 %v2491, %v2579
    %v2581 = vpop.f32.mrf.mxu0
    %v2582 = vadd.f32 %v2493, %v2581
    %2583 = vmatmul.bf16.gmra.mxu0 %v2387
    %v2584 = vpop.f32.mrf.mxu0
    %v2585 = vadd.f32 %v2496, %v2584
    %v2586 = vpop.f32.mrf.mxu0
    %v2587 = vadd.f32 %v2498, %v2586
    %2588 = vmatmul.bf16.gmra.mxu0 %v2389
    %v2589 = vpop.f32.mrf.mxu0
    %v2590 = vadd.f32 %v2501, %v2589
    %v2591 = vpop.f32.mrf.mxu0
    %v2592 = vadd.f32 %v2503, %v2591
    %2593 = vmatmul.bf16.gmra.mxu0 %v2391
    %v2594 = vpop.f32.mrf.mxu0
    %v2595 = vadd.f32 %v2506, %v2594
    %v2596 = vpop.f32.mrf.mxu0
    %v2597 = vadd.f32 %v2508, %v2596
    %2598 = vmatmul.bf16.gmra.mxu0 %v2393
    %v2599 = vpop.f32.mrf.mxu0
    %v2600 = vadd.f32 %v2511, %v2599
    %v2601 = vpop.f32.mrf.mxu0
    %v2602 = vadd.f32 %v2513, %v2601
    %2603 = vdwg.mxu0
    %vm2604 = vcmp.gt.f32.partialorder %v2525, 0.0
    %vm2605 = vcmp.gt.f32.partialorder %v2527, 0.0
    %vm2606 = vcmp.gt.f32.partialorder %v2530, 0.0
    %vm2607 = vcmp.gt.f32.partialorder %v2532, 0.0
    %vm2608 = vcmp.gt.f32.partialorder %v2535, 0.0
    %vm2609 = vcmp.gt.f32.partialorder %v2537, 0.0
    %vm2610 = vcmp.gt.f32.partialorder %v2540, 0.0
    %vm2611 = vcmp.gt.f32.partialorder %v2542, 0.0
    %vm2612 = vcmp.gt.f32.partialorder %v2545, 0.0
    %vm2613 = vcmp.gt.f32.partialorder %v2547, 0.0
    %vm2614 = vcmp.gt.f32.partialorder %v2550, 0.0
    %vm2615 = vcmp.gt.f32.partialorder %v2552, 0.0
    %vm2616 = vcmp.gt.f32.partialorder %v2555, 0.0
    %vm2617 = vcmp.gt.f32.partialorder %v2557, 0.0
    %vm2618 = vcmp.gt.f32.partialorder %v2560, 0.0
    %vm2619 = vcmp.gt.f32.partialorder %v2562, 0.0
    %vm2620 = vcmp.gt.f32.partialorder %v2565, 0.0
    %vm2621 = vcmp.gt.f32.partialorder %v2567, 0.0
    %vm2622 = vcmp.gt.f32.partialorder %v2570, 0.0
    %vm2623 = vcmp.gt.f32.partialorder %v2572, 0.0
    %vm2624 = vcmp.gt.f32.partialorder %v2575, 0.0
    %vm2625 = vcmp.gt.f32.partialorder %v2577, 0.0
    %vm2626 = vcmp.gt.f32.partialorder %v2580, 0.0
    %vm2627 = vcmp.gt.f32.partialorder %v2582, 0.0
    %vm2628 = vcmp.gt.f32.partialorder %v2585, 0.0
    %vm2629 = vcmp.gt.f32.partialorder %v2587, 0.0
    %vm2630 = vcmp.gt.f32.partialorder %v2590, 0.0
    %vm2631 = vcmp.gt.f32.partialorder %v2592, 0.0
    %vm2632 = vcmp.gt.f32.partialorder %v2595, 0.0
    %vm2633 = vcmp.gt.f32.partialorder %v2597, 0.0
    %vm2634 = vcmp.gt.f32.partialorder %v2600, 0.0
    %vm2635 = vcmp.gt.f32.partialorder %v2602, 0.0
    %v2636 = vmin.f32 %v2525, 0.0
    %v2637 = vmin.f32 %v2527, 0.0
    %v2638 = vmin.f32 %v2530, 0.0
    %v2639 = vmin.f32 %v2532, 0.0
    %v2640 = vmin.f32 %v2535, 0.0
    %v2641 = vmin.f32 %v2537, 0.0
    %v2642 = vmin.f32 %v2540, 0.0
    %v2643 = vmin.f32 %v2542, 0.0
    %v2644 = vmin.f32 %v2545, 0.0
    %v2645 = vmin.f32 %v2547, 0.0
    %v2646 = vmin.f32 %v2550, 0.0
    %v2647 = vmin.f32 %v2552, 0.0
    %v2648 = vmin.f32 %v2555, 0.0
    %v2649 = vmin.f32 %v2557, 0.0
    %v2650 = vmin.f32 %v2560, 0.0
    %v2651 = vmin.f32 %v2562, 0.0
    %v2652 = vmin.f32 %v2565, 0.0
    %v2653 = vmin.f32 %v2567, 0.0
    %v2654 = vmin.f32 %v2570, 0.0
    %v2655 = vmin.f32 %v2572, 0.0
    %v2656 = vmin.f32 %v2575, 0.0
    %v2657 = vmin.f32 %v2577, 0.0
    %v2658 = vmin.f32 %v2580, 0.0
    %v2659 = vmin.f32 %v2582, 0.0
    %v2660 = vmin.f32 %v2585, 0.0
    %v2661 = vmin.f32 %v2587, 0.0
    %v2662 = vmin.f32 %v2590, 0.0
    %v2663 = vmin.f32 %v2592, 0.0
    %v2664 = vmin.f32 %v2595, 0.0
    %v2665 = vmin.f32 %v2597, 0.0
    %v2666 = vmin.f32 %v2600, 0.0
    %v2667 = vmin.f32 %v2602, 0.0
    %v2668 = vmul.f32 %v2636, 1.442695
    %v2669 = vpow.pop %v2668
    %v2670 = vmul.f32 %v2637, 1.442695
    %v2671 = vpow.pop %v2670
    %v2672 = vmul.f32 %v2638, 1.442695
    %v2673 = vpow.pop %v2672
    %v2674 = vmul.f32 %v2639, 1.442695
    %v2675 = vpow.pop %v2674
    %v2676 = vmul.f32 %v2640, 1.442695
    %v2677 = vpow.pop %v2676
    %v2678 = vmul.f32 %v2641, 1.442695
    %v2679 = vpow.pop %v2678
    %v2680 = vmul.f32 %v2642, 1.442695
    %v2681 = vpow.pop %v2680
    %v2682 = vmul.f32 %v2643, 1.442695
    %v2683 = vpow.pop %v2682
    %v2684 = vmul.f32 %v2644, 1.442695
    %v2685 = vpow.pop %v2684
    %v2686 = vmul.f32 %v2645, 1.442695
    %v2687 = vpow.pop %v2686
    %v2688 = vmul.f32 %v2646, 1.442695
    %v2689 = vpow.pop %v2688
    %v2690 = vmul.f32 %v2647, 1.442695
    %v2691 = vpow.pop %v2690
    %v2692 = vmul.f32 %v2648, 1.442695
    %v2693 = vpow.pop %v2692
    %v2694 = vmul.f32 %v2649, 1.442695
    %v2695 = vpow.pop %v2694
    %v2696 = vmul.f32 %v2650, 1.442695
    %v2697 = vpow.pop %v2696
    %v2698 = vmul.f32 %v2651, 1.442695
    %v2699 = vpow.pop %v2698
    %v2700 = vmul.f32 %v2652, 1.442695
    %v2701 = vpow.pop %v2700
    %v2702 = vmul.f32 %v2653, 1.442695
    %v2703 = vpow.pop %v2702
    %v2704 = vmul.f32 %v2654, 1.442695
    %v2705 = vpow.pop %v2704
    %v2706 = vmul.f32 %v2655, 1.442695
    %v2707 = vpow.pop %v2706
    %v2708 = vmul.f32 %v2656, 1.442695
    %v2709 = vpow.pop %v2708
    %v2710 = vmul.f32 %v2657, 1.442695
    %v2711 = vpow.pop %v2710
    %v2712 = vmul.f32 %v2658, 1.442695
    %v2713 = vpow.pop %v2712
    %v2714 = vmul.f32 %v2659, 1.442695
    %v2715 = vpow.pop %v2714
    %v2716 = vmul.f32 %v2660, 1.442695
    %v2717 = vpow.pop %v2716
    %v2718 = vmul.f32 %v2661, 1.442695
    %v2719 = vpow.pop %v2718
    %v2720 = vmul.f32 %v2662, 1.442695
    %v2721 = vpow.pop %v2720
    %v2722 = vmul.f32 %v2663, 1.442695
    %v2723 = vpow.pop %v2722
    %v2724 = vmul.f32 %v2664, 1.442695
    %v2725 = vpow.pop %v2724
    %v2726 = vmul.f32 %v2665, 1.442695
    %v2727 = vpow.pop %v2726
    %v2728 = vmul.f32 %v2666, 1.442695
    %v2729 = vpow.pop %v2728
    %v2730 = vmul.f32 %v2667, 1.442695
    %v2731 = vpow.pop %v2730
    %v2732 = vsub.f32 %v2669, 1.0
    %v2733 = vsub.f32 %v2671, 1.0
    %v2734 = vsub.f32 %v2673, 1.0
    %v2735 = vsub.f32 %v2675, 1.0
    %v2736 = vsub.f32 %v2677, 1.0
    %v2737 = vsub.f32 %v2679, 1.0
    %v2738 = vsub.f32 %v2681, 1.0
    %v2739 = vsub.f32 %v2683, 1.0
    %v2740 = vsub.f32 %v2685, 1.0
    %v2741 = vsub.f32 %v2687, 1.0
    %v2742 = vsub.f32 %v2689, 1.0
    %v2743 = vsub.f32 %v2691, 1.0
    %v2744 = vsub.f32 %v2693, 1.0
    %v2745 = vsub.f32 %v2695, 1.0
    %v2746 = vsub.f32 %v2697, 1.0
    %v2747 = vsub.f32 %v2699, 1.0
    %v2748 = vsub.f32 %v2701, 1.0
    %v2749 = vsub.f32 %v2703, 1.0
    %v2750 = vsub.f32 %v2705, 1.0
    %v2751 = vsub.f32 %v2707, 1.0
    %v2752 = vsub.f32 %v2709, 1.0
    %v2753 = vsub.f32 %v2711, 1.0
    %v2754 = vsub.f32 %v2713, 1.0
    %v2755 = vsub.f32 %v2715, 1.0
    %v2756 = vsub.f32 %v2717, 1.0
    %v2757 = vsub.f32 %v2719, 1.0
    %v2758 = vsub.f32 %v2721, 1.0
    %v2759 = vsub.f32 %v2723, 1.0
    %v2760 = vsub.f32 %v2725, 1.0
    %v2761 = vsub.f32 %v2727, 1.0
    %v2762 = vsub.f32 %v2729, 1.0
    %v2763 = vsub.f32 %v2731, 1.0
    %v2764 = vsel %vm2604, %v2525, %v2732
    %v2765 = vsel %vm2605, %v2527, %v2733
    %v2766 = vsel %vm2606, %v2530, %v2734
    %v2767 = vsel %vm2607, %v2532, %v2735
    %v2768 = vsel %vm2608, %v2535, %v2736
    %v2769 = vsel %vm2609, %v2537, %v2737
    %v2770 = vsel %vm2610, %v2540, %v2738
    %v2771 = vsel %vm2611, %v2542, %v2739
    %v2772 = vsel %vm2612, %v2545, %v2740
    %v2773 = vsel %vm2613, %v2547, %v2741
    %v2774 = vsel %vm2614, %v2550, %v2742
    %v2775 = vsel %vm2615, %v2552, %v2743
    %v2776 = vsel %vm2616, %v2555, %v2744
    %v2777 = vsel %vm2617, %v2557, %v2745
    %v2778 = vsel %vm2618, %v2560, %v2746
    %v2779 = vsel %vm2619, %v2562, %v2747
    %v2780 = vsel %vm2620, %v2565, %v2748
    %v2781 = vsel %vm2621, %v2567, %v2749
    %v2782 = vsel %vm2622, %v2570, %v2750
    %v2783 = vsel %vm2623, %v2572, %v2751
    %v2784 = vsel %vm2624, %v2575, %v2752
    %v2785 = vsel %vm2625, %v2577, %v2753
    %v2786 = vsel %vm2626, %v2580, %v2754
    %v2787 = vsel %vm2627, %v2582, %v2755
    %v2788 = vsel %vm2628, %v2585, %v2756
    %v2789 = vsel %vm2629, %v2587, %v2757
    %v2790 = vsel %vm2630, %v2590, %v2758
    %v2791 = vsel %vm2631, %v2592, %v2759
    %v2792 = vsel %vm2632, %v2595, %v2760
    %v2793 = vsel %vm2633, %v2597, %v2761
    %v2794 = vsel %vm2634, %v2600, %v2762
    %v2795 = vsel %vm2635, %v2602, %v2763
    %v2796 = vld [vmem:[%s7] sm:$0xff]
    %v2797 = vld [vmem:[%s7 + $0x8] sm:$0xff]
    %v2798 = vld [vmem:[%s7 + $0x10] sm:$0xff]
    %v2799 = vld [vmem:[%s7 + $0x18] sm:$0xff]
    %v2800 = vld [vmem:[%s7 + $0x20] sm:$0xff]
    %v2801 = vld [vmem:[%s7 + $0x28] sm:$0xff]
    %v2802 = vld [vmem:[%s7 + $0x30] sm:$0xff]
    %v2803 = vld [vmem:[%s7 + $0x38] sm:$0xff]
    %v2804 = vld [vmem:[%s7 + $0x40] sm:$0xff]
    %v2805 = vld [vmem:[%s7 + $0x48] sm:$0xff]
    %v2806 = vld [vmem:[%s7 + $0x50] sm:$0xff]
    %v2807 = vld [vmem:[%s7 + $0x58] sm:$0xff]
    %v2808 = vld [vmem:[%s7 + $0x60] sm:$0xff]
    %v2809 = vld [vmem:[%s7 + $0x68] sm:$0xff]
    %v2810 = vld [vmem:[%s7 + $0x70] sm:$0xff]
    %v2811 = vld [vmem:[%s7 + $0x78] sm:$0xff]
    %v2812 = vld [vmem:[%s7 + $0x80] sm:$0xff]
    %v2813 = vld [vmem:[%s7 + $0x88] sm:$0xff]
    %v2814 = vld [vmem:[%s7 + $0x90] sm:$0xff]
    %v2815 = vld [vmem:[%s7 + $0x98] sm:$0xff]
    %v2816 = vld [vmem:[%s7 + $0xa0] sm:$0xff]
    %v2817 = vld [vmem:[%s7 + $0xa8] sm:$0xff]
    %v2818 = vld [vmem:[%s7 + $0xb0] sm:$0xff]
    %v2819 = vld [vmem:[%s7 + $0xb8] sm:$0xff]
    %v2820 = vld [vmem:[%s7 + $0xc0] sm:$0xff]
    %v2821 = vld [vmem:[%s7 + $0xc8] sm:$0xff]
    %v2822 = vld [vmem:[%s7 + $0xd0] sm:$0xff]
    %v2823 = vld [vmem:[%s7 + $0xd8] sm:$0xff]
    %v2824 = vld [vmem:[%s7 + $0xe0] sm:$0xff]
    %v2825 = vld [vmem:[%s7 + $0xe8] sm:$0xff]
    %v2826 = vld [vmem:[%s7 + $0xf0] sm:$0xff]
    %v2827 = vld [vmem:[%s7 + $0xf8] sm:$0xff]
    %2829 = vset.pattern.permute.xlu0 0
    %2830 = vperm.xlu0 %2829, %v2796
    %v2831 = vpop.permute.xlu0 %2830
    %2834 = vset.pattern.permute.xlu0 0
    %2835 = vperm.xlu0 %2834, %v2797
    %v2836 = vpop.permute.xlu0 %2835
    %2839 = vset.pattern.permute.xlu0 0
    %2840 = vperm.xlu0 %2839, %v2798
    %v2841 = vpop.permute.xlu0 %2840
    %2844 = vset.pattern.permute.xlu0 0
    %2845 = vperm.xlu0 %2844, %v2799
    %v2846 = vpop.permute.xlu0 %2845
    %2849 = vset.pattern.permute.xlu0 0
    %2850 = vperm.xlu0 %2849, %v2800
    %v2851 = vpop.permute.xlu0 %2850
    %2854 = vset.pattern.permute.xlu0 0
    %2855 = vperm.xlu0 %2854, %v2801
    %v2856 = vpop.permute.xlu0 %2855
    %2859 = vset.pattern.permute.xlu0 0
    %2860 = vperm.xlu0 %2859, %v2802
    %v2861 = vpop.permute.xlu0 %2860
    %2864 = vset.pattern.permute.xlu0 0
    %2865 = vperm.xlu0 %2864, %v2803
    %v2866 = vpop.permute.xlu0 %2865
    %2869 = vset.pattern.permute.xlu0 0
    %2870 = vperm.xlu0 %2869, %v2804
    %v2871 = vpop.permute.xlu0 %2870
    %2874 = vset.pattern.permute.xlu0 0
    %2875 = vperm.xlu0 %2874, %v2805
    %v2876 = vpop.permute.xlu0 %2875
    %2879 = vset.pattern.permute.xlu0 0
    %2880 = vperm.xlu0 %2879, %v2806
    %v2881 = vpop.permute.xlu0 %2880
    %2884 = vset.pattern.permute.xlu0 0
    %2885 = vperm.xlu0 %2884, %v2807
    %v2886 = vpop.permute.xlu0 %2885
    %2889 = vset.pattern.permute.xlu0 0
    %2890 = vperm.xlu0 %2889, %v2808
    %v2891 = vpop.permute.xlu0 %2890
    %2894 = vset.pattern.permute.xlu0 0
    %2895 = vperm.xlu0 %2894, %v2809
    %v2896 = vpop.permute.xlu0 %2895
    %2899 = vset.pattern.permute.xlu0 0
    %2900 = vperm.xlu0 %2899, %v2810
    %v2901 = vpop.permute.xlu0 %2900
    %2904 = vset.pattern.permute.xlu0 0
    %2905 = vperm.xlu0 %2904, %v2811
    %v2906 = vpop.permute.xlu0 %2905
    %2909 = vset.pattern.permute.xlu0 0
    %2910 = vperm.xlu0 %2909, %v2812
    %v2911 = vpop.permute.xlu0 %2910
    %2914 = vset.pattern.permute.xlu0 0
    %2915 = vperm.xlu0 %2914, %v2813
    %v2916 = vpop.permute.xlu0 %2915
    %2919 = vset.pattern.permute.xlu0 0
    %2920 = vperm.xlu0 %2919, %v2814
    %v2921 = vpop.permute.xlu0 %2920
    %2924 = vset.pattern.permute.xlu0 0
    %2925 = vperm.xlu0 %2924, %v2815
    %v2926 = vpop.permute.xlu0 %2925
    %2929 = vset.pattern.permute.xlu0 0
    %2930 = vperm.xlu0 %2929, %v2816
    %v2931 = vpop.permute.xlu0 %2930
    %2934 = vset.pattern.permute.xlu0 0
    %2935 = vperm.xlu0 %2934, %v2817
    %v2936 = vpop.permute.xlu0 %2935
    %2939 = vset.pattern.permute.xlu0 0
    %2940 = vperm.xlu0 %2939, %v2818
    %v2941 = vpop.permute.xlu0 %2940
    %2944 = vset.pattern.permute.xlu0 0
    %2945 = vperm.xlu0 %2944, %v2819
    %v2946 = vpop.permute.xlu0 %2945
    %2949 = vset.pattern.permute.xlu0 0
    %2950 = vperm.xlu0 %2949, %v2820
    %v2951 = vpop.permute.xlu0 %2950
    %2954 = vset.pattern.permute.xlu0 0
    %2955 = vperm.xlu0 %2954, %v2821
    %v2956 = vpop.permute.xlu0 %2955
    %2959 = vset.pattern.permute.xlu0 0
    %2960 = vperm.xlu0 %2959, %v2822
    %v2961 = vpop.permute.xlu0 %2960
    %2964 = vset.pattern.permute.xlu0 0
    %2965 = vperm.xlu0 %2964, %v2823
    %v2966 = vpop.permute.xlu0 %2965
    %2969 = vset.pattern.permute.xlu0 0
    %2970 = vperm.xlu0 %2969, %v2824
    %v2971 = vpop.permute.xlu0 %2970
    %2974 = vset.pattern.permute.xlu0 0
    %2975 = vperm.xlu0 %2974, %v2825
    %v2976 = vpop.permute.xlu0 %2975
    %2979 = vset.pattern.permute.xlu0 0
    %2980 = vperm.xlu0 %2979, %v2826
    %v2981 = vpop.permute.xlu0 %2980
    %2984 = vset.pattern.permute.xlu0 0
    %2985 = vperm.xlu0 %2984, %v2827
    %v2986 = vpop.permute.xlu0 %2985
    %v2988 = vmul.f32 %v2764, %v2831
    %v2989 = vmul.f32 %v2765, %v2836
    %v2990 = vmul.f32 %v2766, %v2841
    %v2991 = vmul.f32 %v2767, %v2846
    %v2992 = vmul.f32 %v2768, %v2851
    %v2993 = vmul.f32 %v2769, %v2856
    %v2994 = vmul.f32 %v2770, %v2861
    %v2995 = vmul.f32 %v2771, %v2866
    %v2996 = vmul.f32 %v2772, %v2871
    %v2997 = vmul.f32 %v2773, %v2876
    %v2998 = vmul.f32 %v2774, %v2881
    %v2999 = vmul.f32 %v2775, %v2886
    %v3000 = vmul.f32 %v2776, %v2891
    %v3001 = vmul.f32 %v2777, %v2896
    %v3002 = vmul.f32 %v2778, %v2901
    %v3003 = vmul.f32 %v2779, %v2906
    %v3004 = vmul.f32 %v2780, %v2911
    %v3005 = vmul.f32 %v2781, %v2916
    %v3006 = vmul.f32 %v2782, %v2921
    %v3007 = vmul.f32 %v2783, %v2926
    %v3008 = vmul.f32 %v2784, %v2931
    %v3009 = vmul.f32 %v2785, %v2936
    %v3010 = vmul.f32 %v2786, %v2941
    %v3011 = vmul.f32 %v2787, %v2946
    %v3012 = vmul.f32 %v2788, %v2951
    %v3013 = vmul.f32 %v2789, %v2956
    %v3014 = vmul.f32 %v2790, %v2961
    %v3015 = vmul.f32 %v2791, %v2966
    %v3016 = vmul.f32 %v2792, %v2971
    %v3017 = vmul.f32 %v2793, %v2976
    %v3018 = vmul.f32 %v2794, %v2981
    %v3019 = vmul.f32 %v2795, %v2986
    %vm3020 = vcmask 64512
    %v3021 = vsel %vm3020, %v2988, 0.0
    %v3022 = vsel %vm3020, %v2989, 0.0
    %v3023 = vadd.f32 %v3021, %v3022
    %v3024 = vsel %vm3020, %v2990, 0.0
    %v3025 = vadd.f32 %v3023, %v3024
    %v3026 = vsel %vm3020, %v2991, 0.0
    %v3027 = vadd.f32 %v3025, %v3026
    %v3028 = vsel %vm3020, %v2992, 0.0
    %v3029 = vadd.f32 %v3027, %v3028
    %v3030 = vsel %vm3020, %v2993, 0.0
    %v3031 = vadd.f32 %v3029, %v3030
    %v3032 = vsel %vm3020, %v2994, 0.0
    %v3033 = vadd.f32 %v3031, %v3032
    %v3034 = vsel %vm3020, %v2995, 0.0
    %v3035 = vadd.f32 %v3033, %v3034
    %v3036 = vsel %vm3020, %v2996, 0.0
    %v3037 = vadd.f32 %v3035, %v3036
    %v3038 = vsel %vm3020, %v2997, 0.0
    %v3039 = vadd.f32 %v3037, %v3038
    %v3040 = vsel %vm3020, %v2998, 0.0
    %v3041 = vadd.f32 %v3039, %v3040
    %v3042 = vsel %vm3020, %v2999, 0.0
    %v3043 = vadd.f32 %v3041, %v3042
    %v3044 = vsel %vm3020, %v3000, 0.0
    %v3045 = vadd.f32 %v3043, %v3044
    %v3046 = vsel %vm3020, %v3001, 0.0
    %v3047 = vadd.f32 %v3045, %v3046
    %v3048 = vsel %vm3020, %v3002, 0.0
    %v3049 = vadd.f32 %v3047, %v3048
    %v3050 = vsel %vm3020, %v3003, 0.0
    %v3051 = vadd.f32 %v3049, %v3050
    %v3052 = vsel %vm3020, %v3004, 0.0
    %v3053 = vadd.f32 %v3051, %v3052
    %v3054 = vsel %vm3020, %v3005, 0.0
    %v3055 = vadd.f32 %v3053, %v3054
    %v3056 = vsel %vm3020, %v3006, 0.0
    %v3057 = vadd.f32 %v3055, %v3056
    %v3058 = vsel %vm3020, %v3007, 0.0
    %v3059 = vadd.f32 %v3057, %v3058
    %v3060 = vsel %vm3020, %v3008, 0.0
    %v3061 = vadd.f32 %v3059, %v3060
    %v3062 = vsel %vm3020, %v3009, 0.0
    %v3063 = vadd.f32 %v3061, %v3062
    %v3064 = vsel %vm3020, %v3010, 0.0
    %v3065 = vadd.f32 %v3063, %v3064
    %v3066 = vsel %vm3020, %v3011, 0.0
    %v3067 = vadd.f32 %v3065, %v3066
    %v3068 = vsel %vm3020, %v3012, 0.0
    %v3069 = vadd.f32 %v3067, %v3068
    %v3070 = vsel %vm3020, %v3013, 0.0
    %v3071 = vadd.f32 %v3069, %v3070
    %v3072 = vsel %vm3020, %v3014, 0.0
    %v3073 = vadd.f32 %v3071, %v3072
    %v3074 = vsel %vm3020, %v3015, 0.0
    %v3075 = vadd.f32 %v3073, %v3074
    %v3076 = vsel %vm3020, %v3016, 0.0
    %v3077 = vadd.f32 %v3075, %v3076
    %v3078 = vsel %vm3020, %v3017, 0.0
    %v3079 = vadd.f32 %v3077, %v3078
    %v3080 = vsel %vm3020, %v3018, 0.0
    %v3081 = vadd.f32 %v3079, %v3080
    %v3082 = vsel %vm3020, %v3019, 0.0
    %v3083 = vadd.f32 %v3081, %v3082
    %v3084 = vrot.slane %v3083, 4
    %v3085 = vadd.f32 %v3083, %v3084
    %v3086 = vrot.slane %v3085, 2
    %v3087 = vadd.f32 %v3085, %v3086
    %v3088 = vrot.slane %v3087, 1
    %v3089 = vadd.f32 %v3087, %v3088
    %v3090 = vld [vmem:[#allocation2] sm:$0x1]
    %3092 = vset.pattern.permute.xlu0 0
    %3093 = vperm.xlu0 %3092, %v3090
    %v3094 = vpop.permute.xlu0 %3093
    %v3096 = vperm.slane %v3094, 0
    %v3097 = vadd.f32 %v3089, %v3096
    %vm3098 = vcmask 57344
    %3099 = vst.msk [vmem:[#allocation3] sm:$0x1] %vm3098, %v3097
    // Predicated region
    $region38: #{tpu_custom_call.1} parent=1 // pred_check
      _
    $region39: #{tpu_custom_call.1} parent=1 // pred_check_branch
      %3101 = sbr.rel (0) target = $region41
    $region40: #{tpu_custom_call.1} parent=1 // pred_region
      %3103 = vsyncadd [#allocation4], 0
      %s3105 = sshll.u32 [#allocation3], 4
      %s3106 = int_to_ptr.vmem [resolvable:$true] %s3105
      %s3107 = sshll.u32 %s9, 4
      %s3108 = int_to_ptr.hbm [resolvable:$true] %s3107
      %3110 = dma.vmem_to_hbm [thread:$0]  %s3106, 16, %s3108, [#allocation4]
    $region41: #{tpu_custom_call.1} parent=1 // pred_fallthru
      _
    // Predicated region
    $region42: #{tpu_custom_call.1} parent=1 // pred_check
      _
    $region43: #{tpu_custom_call.1} parent=1 // pred_check_branch
      %3112 = sbr.rel (0) target = $region45
    $region44: #{tpu_custom_call.1} parent=1 // pred_region
      %3114 = dma.done [#allocation4], 16
    $region45: #{tpu_custom_call.1} parent=1 // pred_fallthru
      _
    %3115 = vsyncpa [#allocation4], 1

</llo_original>
